<compile_context>
chip_gen: v5e
topology: v5e:2x2
jax: 0.10.0
libtpu: 0.0.40
codegen_flags: <defaults>
</compile_context>

<pallas_src>
from functools import partial
import math

import jax
import jax.numpy as jnp
from jax.experimental import pallas as pl
from jax.experimental.pallas import tpu as pltpu


def _round_up(x, m):
    return (x + m - 1) // m * m


def attention_kernel(x_ref, wqkv_ref, wproj_ref, bproj_ref,
                     out_ref, attn_ref, qkv_ref,
                     *, num_heads, head_dim, scale, n_valid):
    x = x_ref[0]                                   # (Np, C), lane = C
    Np, C = x.shape

    # Fused QKV projection.  Gate is already folded into the (bf16) weight.
    qkv = jnp.dot(x.astype(jnp.bfloat16), wqkv_ref[...],
                  preferred_element_type=jnp.float32)        # (Np, 3C) f32

    # Single lane-dense (Np, 3C) writeback; head split happens in the wrapper.
    qkv_ref[0] = qkv.astype(qkv_ref.dtype)

    q = qkv[:, 0 * C:1 * C]
    k = qkv[:, 1 * C:2 * C]
    v = qkv[:, 2 * C:3 * C]

    # Head split for the attention matmuls (leading-batch 3-D form, which
    # lowers cleanly; the relayout rides the XLU).
    def split_heads(t):                            # (Np, C) -> (H, Np, d)
        return jnp.transpose(t.reshape(Np, num_heads, head_dim), (1, 0, 2))

    # Fold the softmax scale into q (cheaper than scaling (H, N, N) scores).
    qh = split_heads(q * scale).astype(jnp.bfloat16)
    kh = split_heads(k).astype(jnp.bfloat16)
    vh = split_heads(v).astype(jnp.bfloat16)

    # scores: (H, Np, Np), f32 accumulation on the MXU.
    scores = jnp.einsum('hnd,hmd->hnm', qh, kh,
                        preferred_element_type=jnp.float32)

    if n_valid != Np:
        # Mask padded key columns (static condition: only emitted when the
        # wrapper actually padded the token axis).
        key_mask = jax.lax.broadcasted_iota(jnp.int32, (1, 1, Np), 2) < n_valid
        scores = jnp.where(key_mask, scores, jnp.float32(-1e30))

    # Softmax in f32; the divide goes to the EUP via approximate reciprocal.
    scores = scores - jnp.max(scores, axis=-1, keepdims=True)
    e = jnp.exp(scores)
    attn = e * pl.reciprocal(jnp.sum(e, axis=-1, keepdims=True), approx=True)
    attn_ref[0] = attn.astype(attn_ref.dtype)

    # context: (H, Np, d) -> (Np, C)
    ctx = jnp.einsum('hnm,hmd->hnd', attn.astype(jnp.bfloat16), vh,
                     preferred_element_type=jnp.float32)
    ctx = jnp.transpose(ctx, (1, 0, 2)).reshape(Np, C)

    # Output projection: ctx @ Wproj^T + b  (bf16 operands, f32 accumulate).
    proj = jnp.dot(ctx.astype(jnp.bfloat16), wproj_ref[...],
                   preferred_element_type=jnp.float32) + bproj_ref[...]
    out_ref[0] = proj.astype(out_ref.dtype)


def attention_forward(x, w_qkv, w_proj, b_proj, gate, num_heads):
    """Returns (x_proj, attn_output, attn, [q, k, v], token_prune_ratio)."""
    B, N, C = x.shape
    head_dim = C // num_heads
    scale = head_dim ** (-0.5)

    # ---- Token-axis padding (tile-friendly scores/attn last dims) ----------
    Np = _round_up(N, 128) if N >= 128 else _round_up(N, 8)
    x_p = x if Np == N else jnp.pad(x, ((0, 0), (0, Np - N), (0, 0)))

    # ---- Fold gate into the QKV weight; pre-transpose; bf16 weights --------
    # PyTorch Linear: out = x @ W^T, so scaling output channel o by gate[o%C]
    # is scaling row o of W.
    gate3 = jnp.tile(gate.reshape(C), 3)                          # (3C,)
    wqkv_t = (w_qkv * gate3[:, None]).T.astype(jnp.bfloat16)      # (C, 3C)
    wproj_t = w_proj.T.astype(jnp.bfloat16)                       # (C, C)
    bproj2 = b_proj.reshape(1, C).astype(jnp.float32)             # (1, C)

    kernel = partial(attention_kernel, num_heads=num_heads,
                     head_dim=head_dim, scale=scale, n_valid=N)

    out_shapes = (
        jax.ShapeDtypeStruct((B, Np, C), x.dtype),                 # proj out
        jax.ShapeDtypeStruct((B, num_heads, Np, Np), x.dtype),     # attn
        jax.ShapeDtypeStruct((B, Np, 3 * C), x.dtype),             # qkv (lane-dense)
    )

    grid_spec = pltpu.PrefetchScalarGridSpec(
        num_scalar_prefetch=0,
        grid=(B,),
        in_specs=[
            pl.BlockSpec((1, Np, C), lambda b: (b, 0, 0)),         # x
            pl.BlockSpec((C, 3 * C), lambda b: (0, 0)),            # Wqkv^T (gated)
            pl.BlockSpec((C, C), lambda b: (0, 0)),                # Wproj^T
            pl.BlockSpec((1, C), lambda b: (0, 0)),                # proj bias
        ],
        out_specs=[
            pl.BlockSpec((1, Np, C), lambda b: (b, 0, 0)),
            pl.BlockSpec((1, num_heads, Np, Np), lambda b: (b, 0, 0, 0)),
            pl.BlockSpec((1, Np, 3 * C), lambda b: (b, 0, 0)),
        ],
    )

    # ---- Scheduler hints ----------------------------------------------------
    flops = 2 * B * (Np * C * 3 * C                        # qkv projection
                     + 2 * num_heads * Np * Np * head_dim  # scores + context
                     + Np * C * C)                         # output projection
    out_bytes = sum(math.prod(s.shape) * jnp.dtype(s.dtype).itemsize
                    for s in out_shapes)
    bytes_accessed = int(x_p.size * x_p.dtype.itemsize
                         + wqkv_t.size * 2 + wproj_t.size * 2 + bproj2.size * 4
                         + out_bytes)
    cost = pl.CostEstimate(flops=int(flops),
                           transcendentals=int(B * num_heads * Np * Np),
                           bytes_accessed=bytes_accessed)

    # ---- Explicit VMEM budget (v7x has only 64 MiB / TensorCore) ------------
    elem = 4
    block_bytes = (Np * C                      # x block
                   + Np * C                    # proj-out block
                   + Np * 3 * C                # qkv block
                   + num_heads * Np * Np) * elem
    weight_bytes = (C * 3 * C + C * C) * 2 + C * 4                 # bf16 W + bias
    scratch_bytes = (Np * 3 * C + 3 * num_heads * Np * Np + 4 * Np * C) * elem
    vmem_limit = int(min(max(2 * block_bytes + weight_bytes + scratch_bytes,
                             32 * 1024 * 1024), 64 * 1024 * 1024))

    out, attn, qkv_l = pl.pallas_call(
        kernel,
        out_shape=out_shapes,
        grid_spec=grid_spec,
        compiler_params=pltpu.CompilerParams(
            dimension_semantics=("parallel",),
            vmem_limit_bytes=vmem_limit),
        cost_estimate=cost,
    )(x_p, wqkv_t, wproj_t, bproj2)

    # ---- Cheap XLA-side layout glue (outside the kernel) --------------------
    out = out[:, :N, :]
    attn = attn[:, :, :N, :N]
    qkv_l = qkv_l[:, :N, :]

    def to_heads(t):          # lane-dense (B, N, C) -> (B, H, N, d)
        return jnp.transpose(t.reshape(B, N, num_heads, head_dim), (0, 2, 1, 3))

    q = to_heads(qkv_l[..., 0 * C:1 * C])
    k = to_heads(qkv_l[..., 1 * C:2 * C])
    v = to_heads(qkv_l[..., 2 * C:3 * C])

    attn_output = attn[:, :, 0, :]
    token_prune_ratio = 0
    return out, attn_output, attn, [q, k, v], token_prune_ratio


def reference_forward(x, w_qkv, w_proj, b_proj, gate, num_heads):
    B, N, C = x.shape
    d = C // num_heads
    scale = d ** (-0.5)
    qkv = x @ w_qkv.T
    q, k, v = (qkv[..., :C] * gate, qkv[..., C:2 * C] * gate,
               qkv[..., 2 * C:] * gate)

    def sh(t):
        return jnp.transpose(t.reshape(B, N, num_heads, d), (0, 2, 1, 3))

    q, k, v = sh(q), sh(k), sh(v)
    attn = jax.nn.softmax(jnp.einsum('bhnd,bhmd->bhnm', q, k) * scale, axis=-1)
    ctx = jnp.einsum('bhnm,bhmd->bhnd', attn, v)
    xo = jnp.transpose(ctx, (0, 2, 1, 3)).reshape(B, N, C)
    return xo @ w_proj.T + b_proj, attn, q, k, v


if __name__ == "__main__":
    B, N, C, H = 2, 8, 32, 8   # batch=2, tokens=8, dim=32, heads=8 -> head_dim=4

    key = jax.random.PRNGKey(0)
    k1, k2, k3, k4 = jax.random.split(key, 4)
    x = jax.random.normal(k1, (B, N, C), jnp.float32)
    w_qkv = jax.random.normal(k2, (3 * C, C), jnp.float32) * 0.02   # Linear(C,3C), no bias
    w_proj = jax.random.normal(k3, (C, C), jnp.float32) * 0.02      # Linear(C,C)
    b_proj = jax.random.normal(k4, (C,), jnp.float32) * 0.02
    gate = jnp.ones((C,), jnp.float32)                              # self.gate = ones(C)

    out, attn_out, attn, (q, k, v), ratio = attention_forward(
        x, w_qkv, w_proj, b_proj, gate, H)
    jax.block_until_ready(out)

    # Correctness vs. pure-JAX f32 reference.  Tolerances loosened because the
    # kernel uses bf16 MXU operands (f32 accumulation) + approx reciprocal.
    ref_out, ref_attn, ref_q, ref_k, ref_v = reference_forward(
        x, w_qkv, w_proj, b_proj, gate, H)
    assert jnp.allclose(out, ref_out, atol=1e-2, rtol=1e-2)
    assert jnp.allclose(attn, ref_attn, atol=1e-2, rtol=1e-2)
    assert jnp.allclose(attn_out, ref_attn[:, :, 0, :], atol=1e-2, rtol=1e-2)
    assert jnp.allclose(q, ref_q, atol=1e-2, rtol=1e-2)
    assert jnp.allclose(k, ref_k, atol=1e-2, rtol=1e-2)
    assert jnp.allclose(v, ref_v, atol=1e-2, rtol=1e-2)
    assert ratio == 0

    print("KERNEL_OK")
</pallas_src>

<mosaic_0001>
module attributes {stable_mosaic.version = 11 : i64} {
  func.func @attention_kernel(%arg0: i32, %arg1: memref<1x8x32xf32, #tpu.memory_space<vmem>>, %arg2: memref<32x96xbf16, #tpu.memory_space<vmem>>, %arg3: memref<32x32xbf16, #tpu.memory_space<vmem>>, %arg4: memref<1x32xf32, #tpu.memory_space<vmem>>, %arg5: memref<1x8x32xf32, #tpu.memory_space<vmem>>, %arg6: memref<1x8x8x8xf32, #tpu.memory_space<vmem>>, %arg7: memref<1x8x96xf32, #tpu.memory_space<vmem>>) attributes {dimension_semantics = [#tpu.dimension_semantics<parallel>], iteration_bounds = array<i64: 2>, scalar_prefetch = 0 : i64, scratch_operands = 0 : i64, tpu.core_type = #tpu.core_type<tc>, window_params = [{transform_indices = @transform_0, window_bounds = array<i64: 1, 8, 32>}, {pipeline_mode = #tpu.pipeline_mode<synchronous>, transform_indices = @transform_1, window_bounds = array<i64: 32, 96>}, {pipeline_mode = #tpu.pipeline_mode<synchronous>, transform_indices = @transform_2, window_bounds = array<i64: 32, 32>}, {pipeline_mode = #tpu.pipeline_mode<synchronous>, transform_indices = @transform_3, window_bounds = array<i64: 1, 32>}, {transform_indices = @transform_4, window_bounds = array<i64: 1, 8, 32>}, {transform_indices = @transform_5, window_bounds = array<i64: 1, 8, 8, 8>}, {transform_indices = @transform_6, window_bounds = array<i64: 1, 8, 96>}]} {
    %c0 = arith.constant 0 : index
    %c0_0 = arith.constant 0 : index
    %c0_1 = arith.constant 0 : index
    %0 = vector.load %arg1[%c0, %c0_0, %c0_1] : memref<1x8x32xf32, #tpu.memory_space<vmem>>, vector<1x8x32xf32>
    %1 = vector.shape_cast %0 : vector<1x8x32xf32> to vector<8x32xf32>
    %2 = arith.truncf %1 : vector<8x32xf32> to vector<8x32xbf16>
    %c0_2 = arith.constant 0 : index
    %c0_3 = arith.constant 0 : index
    %3 = vector.load %arg2[%c0_2, %c0_3] : memref<32x96xbf16, #tpu.memory_space<vmem>>, vector<32x96xbf16>
    %cst = arith.constant dense<0.000000e+00> : vector<8x96xf32>
    %4 = tpu.matmul %2, %3, %cst {dimension_numbers = #tpu.dot_dimension_numbers<[1], [0], [0], [1], [0, 0, 1, 1], [], []>} : vector<8x32xbf16>, vector<32x96xbf16>, vector<8x96xf32> -> vector<8x96xf32>
    %c0_4 = arith.constant 0 : index
    %c0_5 = arith.constant 0 : index
    %c0_6 = arith.constant 0 : index
    %5 = vector.load %arg7[%c0_4, %c0_5, %c0_6] : memref<1x8x96xf32, #tpu.memory_space<vmem>>, vector<1x8x96xf32>
    %6 = vector.shape_cast %5 : vector<1x8x96xf32> to vector<8x96xf32>
    %7 = vector.shape_cast %4 : vector<8x96xf32> to vector<1x8x96xf32>
    tpu.vector_store %arg7[%c0_4, %c0_5, %c0_6], %7 {strides = array<i32>} : memref<1x8x96xf32, #tpu.memory_space<vmem>>, vector<1x8x96xf32>,
    %8 = vector.extract_strided_slice %4 {offsets = [0, 0], sizes = [8, 32], strides = [1, 1]} : vector<8x96xf32> to vector<8x32xf32>
    %9 = vector.extract_strided_slice %4 {offsets = [0, 32], sizes = [8, 32], strides = [1, 1]} : vector<8x96xf32> to vector<8x32xf32>
    %10 = vector.extract_strided_slice %4 {offsets = [0, 64], sizes = [8, 32], strides = [1, 1]} : vector<8x96xf32> to vector<8x32xf32>
    %cst_7 = arith.constant 5.000000e-01 : f32
    %11 = vector.broadcast %cst_7 : f32 to vector<8x32xf32>
    %12 = arith.mulf %8, %11 : vector<8x32xf32>
    %13 = vector.shape_cast %12 : vector<8x32xf32> to vector<8x8x4xf32>
    %14 = tpu.transpose %13, [1, 0, 2] : vector<8x8x4xf32> -> vector<8x8x4xf32>
    %15 = arith.truncf %14 : vector<8x8x4xf32> to vector<8x8x4xbf16>
    %16 = vector.shape_cast %9 : vector<8x32xf32> to vector<8x8x4xf32>
    %17 = tpu.transpose %16, [1, 0, 2] : vector<8x8x4xf32> -> vector<8x8x4xf32>
    %18 = arith.truncf %17 : vector<8x8x4xf32> to vector<8x8x4xbf16>
    %19 = vector.shape_cast %10 : vector<8x32xf32> to vector<8x8x4xf32>
    %20 = tpu.transpose %19, [1, 0, 2] : vector<8x8x4xf32> -> vector<8x8x4xf32>
    %21 = arith.truncf %20 : vector<8x8x4xf32> to vector<8x8x4xbf16>
    "tpu.trace_start"() <{level = 10 : i32, message = "hnd,hmd->hnm"}> : () -> ()
    %cst_8 = arith.constant dense<0.000000e+00> : vector<8x8x8xf32>
    %22 = tpu.matmul %15, %18, %cst_8 {dimension_numbers = #tpu.dot_dimension_numbers<[2], [2], [1], [1], [0, 0, 0, 1, 1, 1], [0], [0]>} : vector<8x8x4xbf16>, vector<8x8x4xbf16>, vector<8x8x8xf32> -> vector<8x8x8xf32>
    "tpu.trace_stop"() : () -> ()
    %cst_9 = arith.constant dense<0xFF800000> : vector<8x8xf32>
    %23 = vector.multi_reduction <maximumf>, %22, %cst_9 [2] : vector<8x8x8xf32> to vector<8x8xf32>
    %24 = vector.shape_cast %23 : vector<8x8xf32> to vector<8x8x1xf32>
    %25 = vector.broadcast %24 : vector<8x8x1xf32> to vector<8x8x8xf32>
    %26 = arith.subf %22, %25 : vector<8x8x8xf32>
    %27 = math.exp %26 : vector<8x8x8xf32>
    %cst_10 = arith.constant dense<0.000000e+00> : vector<8x8xf32>
    %28 = vector.multi_reduction <add>, %27, %cst_10 [2] : vector<8x8x8xf32> to vector<8x8xf32>
    %29 = vector.shape_cast %28 : vector<8x8xf32> to vector<8x8x1xf32>
    %30 = tpu.reciprocal %29 {approx = true} : vector<8x8x1xf32> -> vector<8x8x1xf32>
    %31 = vector.broadcast %30 : vector<8x8x1xf32> to vector<8x8x8xf32>
    %32 = arith.mulf %27, %31 : vector<8x8x8xf32>
    %c0_11 = arith.constant 0 : index
    %c0_12 = arith.constant 0 : index
    %c0_13 = arith.constant 0 : index
    %c0_14 = arith.constant 0 : index
    %33 = vector.load %arg6[%c0_11, %c0_12, %c0_13, %c0_14] : memref<1x8x8x8xf32, #tpu.memory_space<vmem>>, vector<1x8x8x8xf32>
    %34 = vector.shape_cast %33 : vector<1x8x8x8xf32> to vector<8x8x8xf32>
    %35 = vector.shape_cast %32 : vector<8x8x8xf32> to vector<1x8x8x8xf32>
    tpu.vector_store %arg6[%c0_11, %c0_12, %c0_13, %c0_14], %35 {strides = array<i32>} : memref<1x8x8x8xf32, #tpu.memory_space<vmem>>, vector<1x8x8x8xf32>,
    %36 = arith.truncf %32 : vector<8x8x8xf32> to vector<8x8x8xbf16>
    "tpu.trace_start"() <{level = 10 : i32, message = "hnm,hmd->hnd"}> : () -> ()
    %cst_15 = arith.constant dense<0.000000e+00> : vector<8x8x4xf32>
    %37 = tpu.matmul %36, %21, %cst_15 {dimension_numbers = #tpu.dot_dimension_numbers<[2], [1], [1], [2], [0, 0, 0, 1, 1, 2], [0], [0]>} : vector<8x8x8xbf16>, vector<8x8x4xbf16>, vector<8x8x4xf32> -> vector<8x8x4xf32>
    "tpu.trace_stop"() : () -> ()
    %38 = tpu.transpose %37, [1, 0, 2] : vector<8x8x4xf32> -> vector<8x8x4xf32>
    %39 = vector.shape_cast %38 : vector<8x8x4xf32> to vector<8x32xf32>
    %40 = arith.truncf %39 : vector<8x32xf32> to vector<8x32xbf16>
    %c0_16 = arith.constant 0 : index
    %c0_17 = arith.constant 0 : index
    %41 = vector.load %arg3[%c0_16, %c0_17] : memref<32x32xbf16, #tpu.memory_space<vmem>>, vector<32x32xbf16>
    %cst_18 = arith.constant dense<0.000000e+00> : vector<8x32xf32>
    %42 = tpu.matmul %40, %41, %cst_18 {dimension_numbers = #tpu.dot_dimension_numbers<[1], [0], [0], [1], [0, 0, 1, 1], [], []>} : vector<8x32xbf16>, vector<32x32xbf16>, vector<8x32xf32> -> vector<8x32xf32>
    %c0_19 = arith.constant 0 : index
    %c0_20 = arith.constant 0 : index
    %43 = vector.load %arg4[%c0_19, %c0_20] : memref<1x32xf32, #tpu.memory_space<vmem>>, vector<1x32xf32>
    %44 = vector.broadcast %43 : vector<1x32xf32> to vector<8x32xf32>
    %45 = arith.addf %42, %44 : vector<8x32xf32>
    %c0_21 = arith.constant 0 : index
    %c0_22 = arith.constant 0 : index
    %c0_23 = arith.constant 0 : index
    %46 = vector.load %arg5[%c0_21, %c0_22, %c0_23] : memref<1x8x32xf32, #tpu.memory_space<vmem>>, vector<1x8x32xf32>
    %47 = vector.shape_cast %46 : vector<1x8x32xf32> to vector<8x32xf32>
    %48 = vector.shape_cast %45 : vector<8x32xf32> to vector<1x8x32xf32>
    tpu.vector_store %arg5[%c0_21, %c0_22, %c0_23], %48 {strides = array<i32>} : memref<1x8x32xf32, #tpu.memory_space<vmem>>, vector<1x8x32xf32>,
    return
  }
  func.func @transform_0(%arg0: i32) -> (i32, i32, i32) {
    %c0_i32 = arith.constant 0 : i32
    %c0_i32_0 = arith.constant 0 : i32
    %c0_i32_1 = arith.constant 0 : i32
    return %arg0, %c0_i32, %c0_i32_0 : i32, i32, i32
  }
  func.func @transform_1(%arg0: i32) -> (i32, i32) {
    %c0_i32 = arith.constant 0 : i32
    %c0_i32_0 = arith.constant 0 : i32
    %c0_i32_1 = arith.constant 0 : i32
    return %c0_i32, %c0_i32_0 : i32, i32
  }
  func.func @transform_2(%arg0: i32) -> (i32, i32) {
    %c0_i32 = arith.constant 0 : i32
    %c0_i32_0 = arith.constant 0 : i32
    %c0_i32_1 = arith.constant 0 : i32
    return %c0_i32, %c0_i32_0 : i32, i32
  }
  func.func @transform_3(%arg0: i32) -> (i32, i32) {
    %c0_i32 = arith.constant 0 : i32
    %c0_i32_0 = arith.constant 0 : i32
    %c0_i32_1 = arith.constant 0 : i32
    return %c0_i32, %c0_i32_0 : i32, i32
  }
  func.func @transform_4(%arg0: i32) -> (i32, i32, i32) {
    %c0_i32 = arith.constant 0 : i32
    %c0_i32_0 = arith.constant 0 : i32
    %c0_i32_1 = arith.constant 0 : i32
    return %arg0, %c0_i32, %c0_i32_0 : i32, i32, i32
  }
  func.func @transform_5(%arg0: i32) -> (i32, i32, i32, i32) {
    %c0_i32 = arith.constant 0 : i32
    %c0_i32_0 = arith.constant 0 : i32
    %c0_i32_1 = arith.constant 0 : i32
    %c0_i32_2 = arith.constant 0 : i32
    return %arg0, %c0_i32, %c0_i32_0, %c0_i32_1 : i32, i32, i32, i32
  }
  func.func @transform_6(%arg0: i32) -> (i32, i32, i32) {
    %c0_i32 = arith.constant 0 : i32
    %c0_i32_0 = arith.constant 0 : i32
    %c0_i32_1 = arith.constant 0 : i32
    return %arg0, %c0_i32, %c0_i32_0 : i32, i32, i32
  }
}

</mosaic_0001>

<llo_original>
// kernel: tpu_custom_call.1
$region0: #{tpu_custom_call.1}
  #allocation0 [shape = 'u32[]', space=smem, size = 0x4, offset = 0x4, fixed_abs, tag = 'smem constant byte address 0x4 - core index']
  #allocation1 [shape = 'u32[72,128]{1,0:T(1,128)}', space=vmem, size = 0x9000, scoped, tag = 'internal scratch']
  %s0 = inlined_call_operand.hbm [shape: f32[2,8,32], index: 0, kind: input, shape index: {}]
  %s1 = inlined_call_operand.hbm [shape: bf16[32,96], index: 1, kind: input, shape index: {}]
  %s2 = inlined_call_operand.hbm [shape: bf16[32,32], index: 2, kind: input, shape index: {}]
  %s3 = inlined_call_operand.vmem [shape: f32[1,32], index: 3, kind: input, shape index: {}]
  %s4 = inlined_call_operand.hbm [shape: f32[2,8,32], index: 4, kind: output, shape index: {0}]
  %s5 = inlined_call_operand.hbm [shape: f32[2,8,8,8], index: 5, kind: output, shape index: {1}]
  %s6 = inlined_call_operand.hbm [shape: f32[2,8,96], index: 6, kind: output, shape index: {2}]
  %7 = xla_tuple %s4, %s5, %s6
  %s8 = sld [smem:[#allocation0]]
  $region77: #{tpu_custom_call.1} parent=0
    _
  %s10 = ssub.s32 1, %s8
  %s11 = scalar_select 0, %s10, %s8
  $region1: #{tpu_custom_call.1} parent=0
    #allocation2 [shape = 'u8[8192]{0}', space=vmem, size = 0x2000, scoped, tag = 'input window, operand 0']
    #allocation3 [shape = 's32[2]{0}', space=sflag, size = 0x8, scoped, tag = 'scoped memory for tpu_custom_call.1']
    #allocation4 [shape = 's32[2]{0}', space=sflag, size = 0x8, scoped, tag = 'scoped memory for tpu_custom_call.1']
    #allocation5 [shape = 'u8[8192]{0}', space=vmem, size = 0x2000, scoped, tag = 'input window, operand 1, single buffered']
    #allocation6 [shape = 's32[1]{0}', space=sflag, size = 0x4, scoped, tag = 'scoped memory for tpu_custom_call.1']
    #allocation7 [shape = 'u8[8192]{0}', space=vmem, size = 0x2000, scoped, tag = 'input window, operand 2, single buffered']
    #allocation8 [shape = 'u8[8192]{0}', space=vmem, size = 0x2000, scoped, tag = 'output window, operand 0']
    #allocation9 [shape = 'u8[65536]{0}', space=vmem, size = 0x10000, scoped, tag = 'output window, operand 1']
    #allocation10 [shape = 's32[2]{0}', space=sflag, size = 0x8, scoped, tag = 'scoped memory for tpu_custom_call.1']
    #allocation11 [shape = 'u8[8192]{0}', space=vmem, size = 0x2000, scoped, tag = 'output window, operand 2']
    %12 = vsyncpa [#allocation3], 0
    %s13 = scalar_lea.sflag [#allocation3], 1
    %14 = vsyncpa %s13, 0
    %15 = vsyncpa [#allocation6], 0
    %16 = vsyncpa [#allocation4], 0
    %s17 = scalar_lea.sflag [#allocation4], 1
    %18 = vsyncpa %s17, 0
    %19 = vsyncpa [#allocation10], 0
    %s20 = scalar_lea.sflag [#allocation10], 1
    %21 = vsyncpa %s20, 0
    loop: start=0, step=1, limit=4
    $region2: #{tpu_custom_call.1} parent=1 // loop_pre_header
      _
    $region3: #{tpu_custom_call.1} parent=1 // loop_header
      %s23 = sphi 0, %s27
      %p24 = scmp.ge.s32.totalorder %s23, 4
      %s33 = sphi 0, %s35
      %s36 = sphi 0, %s33
      %s37 = sphi 0, %s36
      %s53 = sphi 0, %s37
      %s57 = sphi 0, %s57
      %s59 = sphi 0, %s57
      %s60 = sphi 0, %s59
      %s74 = sphi 0, %s60
      %s78 = sphi 0, %s78
      %s80 = sphi 0, %s78
      %s81 = sphi 0, %s80
      %s95 = sphi 0, %s81
      %s99 = sphi 0, %s99
      %s101 = sphi 0, %s99
      %s102 = sphi 0, %s101
      %s116 = sphi 0, %s102
      %s122 = sphi 0, %s124
      %s125 = sphi 0, %s122
      %s126 = sphi 0, %s125
      %s142 = sphi 0, %s126
      %s148 = sphi 0, %s150
      %s151 = sphi 0, %s148
      %s152 = sphi 0, %s151
      %s168 = sphi 0, %s152
      %s174 = sphi 0, %s176
      %s177 = sphi 0, %s174
      %s178 = sphi 0, %s177
      %s194 = sphi 0, %s178
    $region4: #{tpu_custom_call.1} parent=1 // loop_header_branch
      %26 = sbr.rel (%p24) target = $region8
    $region5: #{tpu_custom_call.1} parent=1 // loop_body
      %s28 = ssub.s32 %s23, 1
      %s29 = ssub.s32 %s23, 2
      %s30 = sadd.s32 %s23, 1
      %s31 = ssub.s32 %s23, %s30
      %p32 = scmp.eq.s32.totalorder %s31, 0
      %s34 = sadd.s32 %s33, 1
      %s35 = scalar_select %p32, %s33, %s34
      %p38 = pneg %p32
      %p39 = scmp.eq.s32.totalorder %s23, 1
      %p40 = por %p38, %p39
      %p41 = scmp.ne.s32.totalorder %s33, %s36
      %p42 = scmp.eq.s32.totalorder %s23, 0
      %p43 = por %p41, %p42
      %p44 = scmp.ne.s32.totalorder %s33, %s36
      %p45 = scmp.eq.s32.totalorder %s28, 1
      %p46 = por %p44, %p45
      %p47 = scmp.ne.s32.totalorder %s36, %s37
      %p48 = scmp.eq.s32.totalorder %s28, 0
      %p49 = por %p47, %p48
      %p50 = scmp.ne.s32.totalorder %s36, %s37
      %p51 = scmp.eq.s32.totalorder %s29, 1
      %p52 = por %p50, %p51
      %p54 = scmp.ne.s32.totalorder %s37, %s53
      %p55 = scmp.eq.s32.totalorder %s29, 0
      %p56 = por %p54, %p55
      %s58 = sadd.s32 %s57, 1
      %p61 = scmp.eq.s32.totalorder %s23, 1
      %p62 = scmp.ne.s32.totalorder %s57, %s59
      %p63 = scmp.eq.s32.totalorder %s23, 0
      %p64 = por %p62, %p63
      %p65 = scmp.ne.s32.totalorder %s57, %s59
      %p66 = scmp.eq.s32.totalorder %s28, 1
      %p67 = por %p65, %p66
      %p68 = scmp.ne.s32.totalorder %s59, %s60
      %p69 = scmp.eq.s32.totalorder %s28, 0
      %p70 = por %p68, %p69
      %p71 = scmp.ne.s32.totalorder %s59, %s60
      %p72 = scmp.eq.s32.totalorder %s29, 1
      %p73 = por %p71, %p72
      %p75 = scmp.ne.s32.totalorder %s60, %s74
      %p76 = scmp.eq.s32.totalorder %s29, 0
      %p77 = por %p75, %p76
      %s79 = sadd.s32 %s78, 1
      %p82 = scmp.eq.s32.totalorder %s23, 1
      %p83 = scmp.ne.s32.totalorder %s78, %s80
      %p84 = scmp.eq.s32.totalorder %s23, 0
      %p85 = por %p83, %p84
      %p86 = scmp.ne.s32.totalorder %s78, %s80
      %p87 = scmp.eq.s32.totalorder %s28, 1
      %p88 = por %p86, %p87
      %p89 = scmp.ne.s32.totalorder %s80, %s81
      %p90 = scmp.eq.s32.totalorder %s28, 0
      %p91 = por %p89, %p90
      %p92 = scmp.ne.s32.totalorder %s80, %s81
      %p93 = scmp.eq.s32.totalorder %s29, 1
      %p94 = por %p92, %p93
      %p96 = scmp.ne.s32.totalorder %s81, %s95
      %p97 = scmp.eq.s32.totalorder %s29, 0
      %p98 = por %p96, %p97
      %s100 = sadd.s32 %s99, 1
      %p103 = scmp.eq.s32.totalorder %s23, 1
      %p104 = scmp.ne.s32.totalorder %s99, %s101
      %p105 = scmp.eq.s32.totalorder %s23, 0
      %p106 = por %p104, %p105
      %p107 = scmp.ne.s32.totalorder %s99, %s101
      %p108 = scmp.eq.s32.totalorder %s28, 1
      %p109 = por %p107, %p108
      %p110 = scmp.ne.s32.totalorder %s101, %s102
      %p111 = scmp.eq.s32.totalorder %s28, 0
      %p112 = por %p110, %p111
      %p113 = scmp.ne.s32.totalorder %s101, %s102
      %p114 = scmp.eq.s32.totalorder %s29, 1
      %p115 = por %p113, %p114
      %p117 = scmp.ne.s32.totalorder %s102, %s116
      %p118 = scmp.eq.s32.totalorder %s29, 0
      %p119 = por %p117, %p118
      %s120 = ssub.s32 %s23, %s30
      %p121 = scmp.eq.s32.totalorder %s120, 0
      %s123 = sadd.s32 %s122, 1
      %s124 = scalar_select %p121, %s122, %s123
      %p127 = pneg %p121
      %p128 = scmp.eq.s32.totalorder %s23, 1
      %p129 = por %p127, %p128
      %p130 = scmp.ne.s32.totalorder %s122, %s125
      %p131 = scmp.eq.s32.totalorder %s23, 0
      %p132 = por %p130, %p131
      %p133 = scmp.ne.s32.totalorder %s122, %s125
      %p134 = scmp.eq.s32.totalorder %s28, 1
      %p135 = por %p133, %p134
      %p136 = scmp.ne.s32.totalorder %s125, %s126
      %p137 = scmp.eq.s32.totalorder %s28, 0
      %p138 = por %p136, %p137
      %p139 = scmp.ne.s32.totalorder %s125, %s126
      %p140 = scmp.eq.s32.totalorder %s29, 1
      %p141 = por %p139, %p140
      %p143 = scmp.ne.s32.totalorder %s126, %s142
      %p144 = scmp.eq.s32.totalorder %s29, 0
      %p145 = por %p143, %p144
      %s146 = ssub.s32 %s23, %s30
      %p147 = scmp.eq.s32.totalorder %s146, 0
      %s149 = sadd.s32 %s148, 1
      %s150 = scalar_select %p147, %s148, %s149
      %p153 = pneg %p147
      %p154 = scmp.eq.s32.totalorder %s23, 1
      %p155 = por %p153, %p154
      %p156 = scmp.ne.s32.totalorder %s148, %s151
      %p157 = scmp.eq.s32.totalorder %s23, 0
      %p158 = por %p156, %p157
      %p159 = scmp.ne.s32.totalorder %s148, %s151
      %p160 = scmp.eq.s32.totalorder %s28, 1
      %p161 = por %p159, %p160
      %p162 = scmp.ne.s32.totalorder %s151, %s152
      %p163 = scmp.eq.s32.totalorder %s28, 0
      %p164 = por %p162, %p163
      %p165 = scmp.ne.s32.totalorder %s151, %s152
      %p166 = scmp.eq.s32.totalorder %s29, 1
      %p167 = por %p165, %p166
      %p169 = scmp.ne.s32.totalorder %s152, %s168
      %p170 = scmp.eq.s32.totalorder %s29, 0
      %p171 = por %p169, %p170
      %s172 = ssub.s32 %s23, %s30
      %p173 = scmp.eq.s32.totalorder %s172, 0
      %s175 = sadd.s32 %s174, 1
      %s176 = scalar_select %p173, %s174, %s175
      %p179 = pneg %p173
      %p180 = scmp.eq.s32.totalorder %s23, 1
      %p181 = por %p179, %p180
      %p182 = scmp.ne.s32.totalorder %s174, %s177
      %p183 = scmp.eq.s32.totalorder %s23, 0
      %p184 = por %p182, %p183
      %p185 = scmp.ne.s32.totalorder %s174, %s177
      %p186 = scmp.eq.s32.totalorder %s28, 1
      %p187 = por %p185, %p186
      %p188 = scmp.ne.s32.totalorder %s177, %s178
      %p189 = scmp.eq.s32.totalorder %s28, 0
      %p190 = por %p188, %p189
      %p191 = scmp.ne.s32.totalorder %s177, %s178
      %p192 = scmp.eq.s32.totalorder %s29, 1
      %p193 = por %p191, %p192
      %p195 = scmp.ne.s32.totalorder %s178, %s194
      %p196 = scmp.eq.s32.totalorder %s29, 0
      %p197 = por %p195, %p196
      %p198 = scmp.le.s32.totalorder 1, %s23
      %p199 = scmp.lt.s32.totalorder %s23, 3
      %p200 = pnand %p198, %p199
      %p201 = pneg %p200
      // Predicated region
      $region9: #{tpu_custom_call.1} parent=5 // pred_check
        _
      $region10: #{tpu_custom_call.1} parent=5 // pred_check_branch
        %203 = sbr.rel (%p200) target = $region12
      $region11: #{tpu_custom_call.1} parent=5 // pred_region
        %s204 = ssub.s32 %s23, 1
        // Predicated region
        $region13: #{tpu_custom_call.1} parent=11 // pred_check
          %p205 = pneg %p70
        $region14: #{tpu_custom_call.1} parent=11 // pred_check_branch
          %207 = sbr.rel (%p205) target = $region16
        $region15: #{tpu_custom_call.1} parent=11 // pred_region
          %209 = vsyncadd [#allocation6], 0
          %s210 = sshll.u32 %s1, 4
          %s211 = int_to_ptr.hbm [resolvable:$true] %s210
          %s212 = sshll.u32 [#allocation5], 4
          %s213 = int_to_ptr.vmem [resolvable:$true] %s212
          %218 = dma.hbm_to_vmem [thread:$0]  %s211, 256, %s213, [#allocation6], 64, 64, 4
        $region16: #{tpu_custom_call.1} parent=11 // pred_fallthru
          _
        // Predicated region
        $region17: #{tpu_custom_call.1} parent=11 // pred_check
          %p219 = pneg %p91
        $region18: #{tpu_custom_call.1} parent=11 // pred_check_branch
          %221 = sbr.rel (%p219) target = $region20
        $region19: #{tpu_custom_call.1} parent=11 // pred_region
          %223 = vsyncadd [#allocation6], 0
          %s224 = sshll.u32 %s2, 4
          %s225 = int_to_ptr.hbm [resolvable:$true] %s224
          %s226 = sshll.u32 [#allocation7], 4
          %s227 = int_to_ptr.vmem [resolvable:$true] %s226
          %232 = dma.hbm_to_vmem [thread:$0]  %s225, 256, %s227, [#allocation6], 64, 64, 4
        $region20: #{tpu_custom_call.1} parent=11 // pred_fallthru
          _
        // Predicated region
        $region21: #{tpu_custom_call.1} parent=11 // pred_check
          %p233 = pneg %p112
        $region22: #{tpu_custom_call.1} parent=11 // pred_check_branch
          %235 = sbr.rel (%p233) target = $region24
        $region23: #{tpu_custom_call.1} parent=11 // pred_region
          _
        $region24: #{tpu_custom_call.1} parent=11 // pred_fallthru
          _
      $region12: #{tpu_custom_call.1} parent=5 // pred_fallthru
        _
      %p236 = scmp.lt.s32.totalorder %s23, 2
      // Predicated region
      $region25: #{tpu_custom_call.1} parent=5 // pred_check
        %p237 = pneg %p236
      $region26: #{tpu_custom_call.1} parent=5 // pred_check_branch
        %239 = sbr.rel (%p237) target = $region28
      $region27: #{tpu_custom_call.1} parent=5 // pred_region
        // Predicated region
        $region29: #{tpu_custom_call.1} parent=27 // pred_check
          %p240 = pneg %p43
        $region30: #{tpu_custom_call.1} parent=27 // pred_check_branch
          %242 = sbr.rel (%p240) target = $region32
        $region31: #{tpu_custom_call.1} parent=27 // pred_region
          %s243 = sand.u32 %s33, 1
          %s244 = scalar_lea.sflag [#allocation3], %s243
          %s245 = sand.u32 %s33, 1
          %s246 = smul.addr %s245, 8
          %s247 = scalar_lea.vmem [#allocation2], %s246
          %249 = vsyncadd %s244, 0
          %s250 = smul.addr %s23, 8
          %s251 = scalar_lea.hbm %s0, %s250
          %s253 = sshll.u32 %s251, 4
          %s254 = int_to_ptr.hbm [resolvable:$true] %s253
          %s255 = sshll.u32 %s247, 4
          %s256 = int_to_ptr.vmem [resolvable:$true] %s255
          %258 = dma.hbm_to_vmem [thread:$0]  %s254, 128, %s256, %s244
        $region32: #{tpu_custom_call.1} parent=27 // pred_fallthru
          _
      $region28: #{tpu_custom_call.1} parent=5 // pred_fallthru
        _
      %p259 = scmp.le.s32.totalorder 1, %s23
      %p260 = scmp.lt.s32.totalorder %s23, 3
      %p261 = pnand %p259, %p260
      %p262 = pneg %p261
      // Predicated region
      $region33: #{tpu_custom_call.1} parent=5 // pred_check
        _
      $region34: #{tpu_custom_call.1} parent=5 // pred_check_branch
        %264 = sbr.rel (%p261) target = $region36
      $region35: #{tpu_custom_call.1} parent=5 // pred_region
        %s265 = ssub.s32 %s23, 1
        %s266 = sand.u32 %s36, 1
        %s267 = scalar_lea.sflag [#allocation3], %s266
        %s268 = sand.u32 %s36, 1
        %s269 = smul.addr %s268, 8
        %s270 = scalar_lea.vmem [#allocation2], %s269
        // Predicated region
        $region37: #{tpu_custom_call.1} parent=35 // pred_check
          %p271 = pneg %p49
        $region38: #{tpu_custom_call.1} parent=35 // pred_check_branch
          %273 = sbr.rel (%p271) target = $region40
        $region39: #{tpu_custom_call.1} parent=35 // pred_region
          %275 = dma.done %s267, 128
        $region40: #{tpu_custom_call.1} parent=35 // pred_fallthru
          _
        // Predicated region
        $region41: #{tpu_custom_call.1} parent=35 // pred_check
          %p276 = pneg %p70
        $region42: #{tpu_custom_call.1} parent=35 // pred_check_branch
          %278 = sbr.rel (%p276) target = $region44
        $region43: #{tpu_custom_call.1} parent=35 // pred_region
          %280 = dma.done [#allocation6], 256
        $region44: #{tpu_custom_call.1} parent=35 // pred_fallthru
          _
        // Predicated region
        $region45: #{tpu_custom_call.1} parent=35 // pred_check
          %p281 = pneg %p91
        $region46: #{tpu_custom_call.1} parent=35 // pred_check_branch
          %283 = sbr.rel (%p281) target = $region48
        $region47: #{tpu_custom_call.1} parent=35 // pred_region
          %285 = dma.done [#allocation6], 256
        $region48: #{tpu_custom_call.1} parent=35 // pred_fallthru
          _
        %s286 = sand.u32 %s36, 1
        %s287 = scalar_lea.sflag [#allocation3], %s286
        %s288 = sand.u32 %s36, 1
        %s289 = smul.addr %s288, 8
        %s290 = scalar_lea.vmem [#allocation2], %s289
        %p291 = pneg %p49
        %p292 = pneg %p46
        %p293 = pneg %p70
        %p294 = pneg %p67
        %p295 = pneg %p91
        %p296 = pneg %p88
        %p297 = pneg %p112
        %p298 = pneg %p109
        %p299 = pneg %p138
        %p300 = pneg %p135
        %s301 = sand.u32 %s125, 1
        %s302 = scalar_lea.sflag [#allocation4], %s301
        %s303 = sand.u32 %s125, 1
        %s304 = smul.addr %s303, 8
        %s305 = scalar_lea.vmem [#allocation8], %s304
        %p306 = pneg %p164
        %p307 = pneg %p161
        %s308 = sand.u32 %s28, 1
        %s309 = scalar_lea.sflag [#allocation10], %s308
        %s310 = sand.u32 %s151, 1
        %s311 = smul.addr %s310, 64
        %s312 = scalar_lea.vmem [#allocation9], %s311
        %p313 = pneg %p190
        %p314 = pneg %p187
        %s315 = sand.u32 %s28, 1
        %s316 = scalar_lea.sflag [#allocation10], %s315
        %s317 = sand.u32 %s177, 1
        %s318 = smul.addr %s317, 8
        %s319 = scalar_lea.vmem [#allocation11], %s318
        %v321 = vld [vmem:[%s270] sm:$0xff]
        %v322 = vpack.c.bf16 %v321, %v321
        %v323 = vld [vmem:[#allocation5] sm:$0xf]
        %v324 = vld [vmem:[#allocation5 + $0x4] sm:$0xf]
        %v325 = vld [vmem:[#allocation5 + $0x8] sm:$0xf]
        %v326 = vld [vmem:[#allocation5 + $0xc] sm:$0xf]
        %v331 = vunpack.c.l.b16 %v323
        %v332 = vunpack.c.l.b16 %v324
        %v333 = vunpack.c.l.b16 %v325
        %v334 = vunpack.c.l.b16 %v326
        %v335 = vpack.c.b16 %v332, %v331
        %v336 = vpack.c.b16 %v334, %v333
        %vm339 = vcmask 261120
        %v341 = vsel %vm339, %v322, 0
        %343 = vmatpush.bf16.msra.mxu0 0
        %344 = vmatpush.bf16.msra.mxu0 0
        %345 = vmatpush.bf16.msra.mxu0 0
        %346 = vmatpush.bf16.msra.mxu0 0
        %347 = vmatpush.bf16.msra.mxu0 0
        %348 = vmatpush.bf16.msra.mxu0 0
        %349 = vmatpush.bf16.msra.mxu0 %v336
        %350 = vmatpush.bf16.msra.mxu0 %v335
        %351 = vmatmul.bf16.gmra.mxu0 %v341
        %v352 = vpop.f32.mrf.mxu0
        %v353 = vadd.f32 0.0, %v352
        %v354 = vpop.f32.mrf.mxu0
        %355 = vdwg.mxu0
        %vm356 = vcmask 785408
        %357 = vst.msk [vmem:[%s319] sm:$0xff] %vm356, %v353
        %v358 = vmul.f32 %v353, 0.5
        %360 = vrot.lane.b32.xlu0 %v358, 124
        %v361 = vpop.permute.xlu0 %360
        %363 = vrot.lane.b32.xlu0 %v358, 120
        %v364 = vpop.permute.xlu0 %363
        %366 = vrot.lane.b32.xlu0 %v358, 116
        %v367 = vpop.permute.xlu0 %366
        %369 = vrot.lane.b32.xlu0 %v358, 112
        %v370 = vpop.permute.xlu0 %369
        %372 = vrot.lane.b32.xlu0 %v358, 108
        %v373 = vpop.permute.xlu0 %372
        %375 = vrot.lane.b32.xlu0 %v358, 104
        %v376 = vpop.permute.xlu0 %375
        %378 = vrot.lane.b32.xlu0 %v358, 100
        %v379 = vpop.permute.xlu0 %378
        %v381 = vrot.slane %v364, 4
        %vm382 = vcmask 1047556
        %v383 = vsel %vm382, %v381, %v358
        %v384 = vrot.slane %v358, 4
        %v385 = vsel %vm382, %v364, %v384
        %v387 = vunpack.c.l.s4 1983009808
        %v388 = vunpack.c.0.s8 %v387
        %v389 = vperm.slane %v383, %v388
        %v391 = vunpack.c.l.s4 1983009808
        %v392 = vunpack.c.0.s8 %v391
        %v393 = vperm.slane %v385, %v392
        %v394 = vrot.slane %v367, 4
        %v395 = vsel %vm382, %v394, %v361
        %v396 = vrot.slane %v361, 4
        %v397 = vsel %vm382, %v367, %v396
        %v399 = vunpack.c.l.s4 1983009808
        %v400 = vunpack.c.0.s8 %v399
        %v401 = vperm.slane %v395, %v400
        %v403 = vunpack.c.l.s4 1983009808
        %v404 = vunpack.c.0.s8 %v403
        %v405 = vperm.slane %v397, %v404
        %v406 = vrot.slane %v376, 4
        %v407 = vsel %vm382, %v406, %v370
        %v408 = vrot.slane %v370, 4
        %v409 = vsel %vm382, %v376, %v408
        %v411 = vunpack.c.l.s4 1983009808
        %v412 = vunpack.c.0.s8 %v411
        %v413 = vperm.slane %v407, %v412
        %v415 = vunpack.c.l.s4 1983009808
        %v416 = vunpack.c.0.s8 %v415
        %v417 = vperm.slane %v409, %v416
        %v418 = vrot.slane %v379, 4
        %v419 = vsel %vm382, %v418, %v373
        %v420 = vrot.slane %v373, 4
        %v421 = vsel %vm382, %v379, %v420
        %v423 = vunpack.c.l.s4 1983009808
        %v424 = vunpack.c.0.s8 %v423
        %v425 = vperm.slane %v419, %v424
        %v427 = vunpack.c.l.s4 1983009808
        %v428 = vunpack.c.0.s8 %v427
        %v429 = vperm.slane %v421, %v428
        %v430 = vrot.slane %v401, 4
        %v431 = vsel %vm382, %v430, %v389
        %v432 = vrot.slane %v389, 4
        %v433 = vsel %vm382, %v401, %v432
        %v435 = vunpack.c.l.s4 1934713408
        %v436 = vunpack.c.0.s8 %v435
        %v437 = vperm.slane %v431, %v436
        %v439 = vunpack.c.l.s4 1934713408
        %v440 = vunpack.c.0.s8 %v439
        %v441 = vperm.slane %v433, %v440
        %v442 = vrot.slane %v405, 4
        %v443 = vsel %vm382, %v442, %v393
        %v444 = vrot.slane %v393, 4
        %v445 = vsel %vm382, %v405, %v444
        %v447 = vunpack.c.l.s4 1934713408
        %v448 = vunpack.c.0.s8 %v447
        %v449 = vperm.slane %v443, %v448
        %v451 = vunpack.c.l.s4 1934713408
        %v452 = vunpack.c.0.s8 %v451
        %v453 = vperm.slane %v445, %v452
        %v454 = vrot.slane %v425, 4
        %v455 = vsel %vm382, %v454, %v413
        %v456 = vrot.slane %v413, 4
        %v457 = vsel %vm382, %v425, %v456
        %v459 = vunpack.c.l.s4 1934713408
        %v460 = vunpack.c.0.s8 %v459
        %v461 = vperm.slane %v455, %v460
        %v463 = vunpack.c.l.s4 1934713408
        %v464 = vunpack.c.0.s8 %v463
        %v465 = vperm.slane %v457, %v464
        %v466 = vrot.slane %v429, 4
        %v467 = vsel %vm382, %v466, %v417
        %v468 = vrot.slane %v417, 4
        %v469 = vsel %vm382, %v429, %v468
        %v471 = vunpack.c.l.s4 1934713408
        %v472 = vunpack.c.0.s8 %v471
        %v473 = vperm.slane %v467, %v472
        %v475 = vunpack.c.l.s4 1934713408
        %v476 = vunpack.c.0.s8 %v475
        %v477 = vperm.slane %v469, %v476
        %v478 = vrot.slane %v461, 4
        %v479 = vsel %vm382, %v478, %v437
        %v480 = vrot.slane %v437, 4
        %v481 = vsel %vm382, %v461, %v480
        %v482 = vrot.slane %v465, 4
        %v483 = vsel %vm382, %v482, %v441
        %v484 = vrot.slane %v441, 4
        %v485 = vsel %vm382, %v465, %v484
        %v486 = vrot.slane %v473, 4
        %v487 = vsel %vm382, %v486, %v449
        %v488 = vrot.slane %v449, 4
        %v489 = vsel %vm382, %v473, %v488
        %v490 = vrot.slane %v477, 4
        %v491 = vsel %vm382, %v490, %v453
        %v492 = vrot.slane %v453, 4
        %v493 = vsel %vm382, %v477, %v492
        %v494 = vrot.slane %v483, 4
        %v495 = vsel %vm382, %v494, %v479
        %v496 = vrot.slane %v479, 4
        %v497 = vsel %vm382, %v483, %v496
        %v499 = vunpack.c.l.s4 1983009808
        %v500 = vunpack.c.0.s8 %v499
        %v501 = vperm.slane %v495, %v500
        %v503 = vunpack.c.l.s4 1983009808
        %v504 = vunpack.c.0.s8 %v503
        %v505 = vperm.slane %v497, %v504
        %v506 = vrot.slane %v485, 4
        %v507 = vsel %vm382, %v506, %v481
        %v508 = vrot.slane %v481, 4
        %v509 = vsel %vm382, %v485, %v508
        %v511 = vunpack.c.l.s4 1983009808
        %v512 = vunpack.c.0.s8 %v511
        %v513 = vperm.slane %v507, %v512
        %v515 = vunpack.c.l.s4 1983009808
        %v516 = vunpack.c.0.s8 %v515
        %v517 = vperm.slane %v509, %v516
        %v518 = vrot.slane %v491, 4
        %v519 = vsel %vm382, %v518, %v487
        %v520 = vrot.slane %v487, 4
        %v521 = vsel %vm382, %v491, %v520
        %v523 = vunpack.c.l.s4 1983009808
        %v524 = vunpack.c.0.s8 %v523
        %v525 = vperm.slane %v519, %v524
        %v527 = vunpack.c.l.s4 1983009808
        %v528 = vunpack.c.0.s8 %v527
        %v529 = vperm.slane %v521, %v528
        %v530 = vrot.slane %v493, 4
        %v531 = vsel %vm382, %v530, %v489
        %v532 = vrot.slane %v489, 4
        %v533 = vsel %vm382, %v493, %v532
        %v535 = vunpack.c.l.s4 1983009808
        %v536 = vunpack.c.0.s8 %v535
        %v537 = vperm.slane %v531, %v536
        %v539 = vunpack.c.l.s4 1983009808
        %v540 = vunpack.c.0.s8 %v539
        %v541 = vperm.slane %v533, %v540
        %v542 = vrot.slane %v513, 4
        %v543 = vsel %vm382, %v542, %v501
        %v544 = vrot.slane %v501, 4
        %v545 = vsel %vm382, %v513, %v544
        %v547 = vunpack.c.l.s4 1934713408
        %v548 = vunpack.c.0.s8 %v547
        %v549 = vperm.slane %v543, %v548
        %v551 = vunpack.c.l.s4 1934713408
        %v552 = vunpack.c.0.s8 %v551
        %v553 = vperm.slane %v545, %v552
        %v554 = vrot.slane %v517, 4
        %v555 = vsel %vm382, %v554, %v505
        %v556 = vrot.slane %v505, 4
        %v557 = vsel %vm382, %v517, %v556
        %v559 = vunpack.c.l.s4 1934713408
        %v560 = vunpack.c.0.s8 %v559
        %v561 = vperm.slane %v555, %v560
        %v563 = vunpack.c.l.s4 1934713408
        %v564 = vunpack.c.0.s8 %v563
        %v565 = vperm.slane %v557, %v564
        %v566 = vrot.slane %v537, 4
        %v567 = vsel %vm382, %v566, %v525
        %v568 = vrot.slane %v525, 4
        %v569 = vsel %vm382, %v537, %v568
        %v571 = vunpack.c.l.s4 1934713408
        %v572 = vunpack.c.0.s8 %v571
        %v573 = vperm.slane %v567, %v572
        %v575 = vunpack.c.l.s4 1934713408
        %v576 = vunpack.c.0.s8 %v575
        %v577 = vperm.slane %v569, %v576
        %v578 = vrot.slane %v541, 4
        %v579 = vsel %vm382, %v578, %v529
        %v580 = vrot.slane %v529, 4
        %v581 = vsel %vm382, %v541, %v580
        %v583 = vunpack.c.l.s4 1934713408
        %v584 = vunpack.c.0.s8 %v583
        %v585 = vperm.slane %v579, %v584
        %v587 = vunpack.c.l.s4 1934713408
        %v588 = vunpack.c.0.s8 %v587
        %v589 = vperm.slane %v581, %v588
        %v590 = vrot.slane %v573, 4
        %v591 = vsel %vm382, %v590, %v549
        %v592 = vrot.slane %v549, 4
        %v593 = vsel %vm382, %v573, %v592
        %v594 = vrot.slane %v577, 4
        %v595 = vsel %vm382, %v594, %v553
        %v596 = vrot.slane %v553, 4
        %v597 = vsel %vm382, %v577, %v596
        %v598 = vrot.slane %v585, 4
        %v599 = vsel %vm382, %v598, %v561
        %v600 = vrot.slane %v561, 4
        %v601 = vsel %vm382, %v585, %v600
        %v602 = vrot.slane %v589, 4
        %v603 = vsel %vm382, %v602, %v565
        %v604 = vrot.slane %v565, 4
        %v605 = vsel %vm382, %v589, %v604
        %v606 = vpack.c.bf16 %v591, %v591
        %v607 = vpack.c.bf16 %v593, %v593
        %v608 = vpack.c.bf16 %v595, %v595
        %v609 = vpack.c.bf16 %v597, %v597
        %v610 = vpack.c.bf16 %v599, %v599
        %v611 = vpack.c.bf16 %v601, %v601
        %v612 = vpack.c.bf16 %v603, %v603
        %v613 = vpack.c.bf16 %v605, %v605
        %615 = vrot.lane.b32.xlu0 %v353, 124
        %v616 = vpop.permute.xlu0 %615
        %617 = vrot.lane.b32.xlu0 %v353, 120
        %v618 = vpop.permute.xlu0 %617
        %619 = vrot.lane.b32.xlu0 %v353, 116
        %v620 = vpop.permute.xlu0 %619
        %621 = vrot.lane.b32.xlu0 %v353, 112
        %v622 = vpop.permute.xlu0 %621
        %623 = vrot.lane.b32.xlu0 %v353, 108
        %v624 = vpop.permute.xlu0 %623
        %625 = vrot.lane.b32.xlu0 %v353, 104
        %v626 = vpop.permute.xlu0 %625
        %627 = vrot.lane.b32.xlu0 %v353, 100
        %v628 = vpop.permute.xlu0 %627
        %629 = vrot.lane.b32.xlu0 %v353, 96
        %v630 = vpop.permute.xlu0 %629
        %631 = vrot.lane.b32.xlu0 %v616, 96
        %v632 = vpop.permute.xlu0 %631
        %633 = vrot.lane.b32.xlu0 %v618, 96
        %v634 = vpop.permute.xlu0 %633
        %635 = vrot.lane.b32.xlu0 %v620, 96
        %v636 = vpop.permute.xlu0 %635
        %637 = vrot.lane.b32.xlu0 %v622, 96
        %v638 = vpop.permute.xlu0 %637
        %639 = vrot.lane.b32.xlu0 %v624, 96
        %v640 = vpop.permute.xlu0 %639
        %641 = vrot.lane.b32.xlu0 %v626, 96
        %v642 = vpop.permute.xlu0 %641
        %643 = vrot.lane.b32.xlu0 %v628, 96
        %v644 = vpop.permute.xlu0 %643
        %v653 = vrot.slane %v634, 4
        %v654 = vsel %vm382, %v653, %v630
        %v655 = vrot.slane %v630, 4
        %v656 = vsel %vm382, %v634, %v655
        %v658 = vunpack.c.l.s4 1983009808
        %v659 = vunpack.c.0.s8 %v658
        %v660 = vperm.slane %v654, %v659
        %v662 = vunpack.c.l.s4 1983009808
        %v663 = vunpack.c.0.s8 %v662
        %v664 = vperm.slane %v656, %v663
        %v665 = vrot.slane %v636, 4
        %v666 = vsel %vm382, %v665, %v632
        %v667 = vrot.slane %v632, 4
        %v668 = vsel %vm382, %v636, %v667
        %v670 = vunpack.c.l.s4 1983009808
        %v671 = vunpack.c.0.s8 %v670
        %v672 = vperm.slane %v666, %v671
        %v674 = vunpack.c.l.s4 1983009808
        %v675 = vunpack.c.0.s8 %v674
        %v676 = vperm.slane %v668, %v675
        %v677 = vrot.slane %v642, 4
        %v678 = vsel %vm382, %v677, %v638
        %v679 = vrot.slane %v638, 4
        %v680 = vsel %vm382, %v642, %v679
        %v682 = vunpack.c.l.s4 1983009808
        %v683 = vunpack.c.0.s8 %v682
        %v684 = vperm.slane %v678, %v683
        %v686 = vunpack.c.l.s4 1983009808
        %v687 = vunpack.c.0.s8 %v686
        %v688 = vperm.slane %v680, %v687
        %v689 = vrot.slane %v644, 4
        %v690 = vsel %vm382, %v689, %v640
        %v691 = vrot.slane %v640, 4
        %v692 = vsel %vm382, %v644, %v691
        %v694 = vunpack.c.l.s4 1983009808
        %v695 = vunpack.c.0.s8 %v694
        %v696 = vperm.slane %v690, %v695
        %v698 = vunpack.c.l.s4 1983009808
        %v699 = vunpack.c.0.s8 %v698
        %v700 = vperm.slane %v692, %v699
        %v701 = vrot.slane %v672, 4
        %v702 = vsel %vm382, %v701, %v660
        %v703 = vrot.slane %v660, 4
        %v704 = vsel %vm382, %v672, %v703
        %v706 = vunpack.c.l.s4 1934713408
        %v707 = vunpack.c.0.s8 %v706
        %v708 = vperm.slane %v702, %v707
        %v710 = vunpack.c.l.s4 1934713408
        %v711 = vunpack.c.0.s8 %v710
        %v712 = vperm.slane %v704, %v711
        %v713 = vrot.slane %v676, 4
        %v714 = vsel %vm382, %v713, %v664
        %v715 = vrot.slane %v664, 4
        %v716 = vsel %vm382, %v676, %v715
        %v718 = vunpack.c.l.s4 1934713408
        %v719 = vunpack.c.0.s8 %v718
        %v720 = vperm.slane %v714, %v719
        %v722 = vunpack.c.l.s4 1934713408
        %v723 = vunpack.c.0.s8 %v722
        %v724 = vperm.slane %v716, %v723
        %v725 = vrot.slane %v696, 4
        %v726 = vsel %vm382, %v725, %v684
        %v727 = vrot.slane %v684, 4
        %v728 = vsel %vm382, %v696, %v727
        %v730 = vunpack.c.l.s4 1934713408
        %v731 = vunpack.c.0.s8 %v730
        %v732 = vperm.slane %v726, %v731
        %v734 = vunpack.c.l.s4 1934713408
        %v735 = vunpack.c.0.s8 %v734
        %v736 = vperm.slane %v728, %v735
        %v737 = vrot.slane %v700, 4
        %v738 = vsel %vm382, %v737, %v688
        %v739 = vrot.slane %v688, 4
        %v740 = vsel %vm382, %v700, %v739
        %v742 = vunpack.c.l.s4 1934713408
        %v743 = vunpack.c.0.s8 %v742
        %v744 = vperm.slane %v738, %v743
        %v746 = vunpack.c.l.s4 1934713408
        %v747 = vunpack.c.0.s8 %v746
        %v748 = vperm.slane %v740, %v747
        %v749 = vrot.slane %v732, 4
        %v750 = vsel %vm382, %v749, %v708
        %v751 = vrot.slane %v708, 4
        %v752 = vsel %vm382, %v732, %v751
        %v753 = vrot.slane %v736, 4
        %v754 = vsel %vm382, %v753, %v712
        %v755 = vrot.slane %v712, 4
        %v756 = vsel %vm382, %v736, %v755
        %v757 = vrot.slane %v744, 4
        %v758 = vsel %vm382, %v757, %v720
        %v759 = vrot.slane %v720, 4
        %v760 = vsel %vm382, %v744, %v759
        %v761 = vrot.slane %v748, 4
        %v762 = vsel %vm382, %v761, %v724
        %v763 = vrot.slane %v724, 4
        %v764 = vsel %vm382, %v748, %v763
        %v765 = vrot.slane %v754, 4
        %v766 = vsel %vm382, %v765, %v750
        %v767 = vrot.slane %v750, 4
        %v768 = vsel %vm382, %v754, %v767
        %v770 = vunpack.c.l.s4 1983009808
        %v771 = vunpack.c.0.s8 %v770
        %v772 = vperm.slane %v766, %v771
        %v774 = vunpack.c.l.s4 1983009808
        %v775 = vunpack.c.0.s8 %v774
        %v776 = vperm.slane %v768, %v775
        %v777 = vrot.slane %v756, 4
        %v778 = vsel %vm382, %v777, %v752
        %v779 = vrot.slane %v752, 4
        %v780 = vsel %vm382, %v756, %v779
        %v782 = vunpack.c.l.s4 1983009808
        %v783 = vunpack.c.0.s8 %v782
        %v784 = vperm.slane %v778, %v783
        %v786 = vunpack.c.l.s4 1983009808
        %v787 = vunpack.c.0.s8 %v786
        %v788 = vperm.slane %v780, %v787
        %v789 = vrot.slane %v762, 4
        %v790 = vsel %vm382, %v789, %v758
        %v791 = vrot.slane %v758, 4
        %v792 = vsel %vm382, %v762, %v791
        %v794 = vunpack.c.l.s4 1983009808
        %v795 = vunpack.c.0.s8 %v794
        %v796 = vperm.slane %v790, %v795
        %v798 = vunpack.c.l.s4 1983009808
        %v799 = vunpack.c.0.s8 %v798
        %v800 = vperm.slane %v792, %v799
        %v801 = vrot.slane %v764, 4
        %v802 = vsel %vm382, %v801, %v760
        %v803 = vrot.slane %v760, 4
        %v804 = vsel %vm382, %v764, %v803
        %v806 = vunpack.c.l.s4 1983009808
        %v807 = vunpack.c.0.s8 %v806
        %v808 = vperm.slane %v802, %v807
        %v810 = vunpack.c.l.s4 1983009808
        %v811 = vunpack.c.0.s8 %v810
        %v812 = vperm.slane %v804, %v811
        %v813 = vrot.slane %v784, 4
        %v814 = vsel %vm382, %v813, %v772
        %v815 = vrot.slane %v772, 4
        %v816 = vsel %vm382, %v784, %v815
        %v818 = vunpack.c.l.s4 1934713408
        %v819 = vunpack.c.0.s8 %v818
        %v820 = vperm.slane %v814, %v819
        %v822 = vunpack.c.l.s4 1934713408
        %v823 = vunpack.c.0.s8 %v822
        %v824 = vperm.slane %v816, %v823
        %v825 = vrot.slane %v788, 4
        %v826 = vsel %vm382, %v825, %v776
        %v827 = vrot.slane %v776, 4
        %v828 = vsel %vm382, %v788, %v827
        %v830 = vunpack.c.l.s4 1934713408
        %v831 = vunpack.c.0.s8 %v830
        %v832 = vperm.slane %v826, %v831
        %v834 = vunpack.c.l.s4 1934713408
        %v835 = vunpack.c.0.s8 %v834
        %v836 = vperm.slane %v828, %v835
        %v837 = vrot.slane %v808, 4
        %v838 = vsel %vm382, %v837, %v796
        %v839 = vrot.slane %v796, 4
        %v840 = vsel %vm382, %v808, %v839
        %v842 = vunpack.c.l.s4 1934713408
        %v843 = vunpack.c.0.s8 %v842
        %v844 = vperm.slane %v838, %v843
        %v846 = vunpack.c.l.s4 1934713408
        %v847 = vunpack.c.0.s8 %v846
        %v848 = vperm.slane %v840, %v847
        %v849 = vrot.slane %v812, 4
        %v850 = vsel %vm382, %v849, %v800
        %v851 = vrot.slane %v800, 4
        %v852 = vsel %vm382, %v812, %v851
        %v854 = vunpack.c.l.s4 1934713408
        %v855 = vunpack.c.0.s8 %v854
        %v856 = vperm.slane %v850, %v855
        %v858 = vunpack.c.l.s4 1934713408
        %v859 = vunpack.c.0.s8 %v858
        %v860 = vperm.slane %v852, %v859
        %v861 = vrot.slane %v844, 4
        %v862 = vsel %vm382, %v861, %v820
        %v863 = vrot.slane %v820, 4
        %v864 = vsel %vm382, %v844, %v863
        %v865 = vrot.slane %v848, 4
        %v866 = vsel %vm382, %v865, %v824
        %v867 = vrot.slane %v824, 4
        %v868 = vsel %vm382, %v848, %v867
        %v869 = vrot.slane %v856, 4
        %v870 = vsel %vm382, %v869, %v832
        %v871 = vrot.slane %v832, 4
        %v872 = vsel %vm382, %v856, %v871
        %v873 = vrot.slane %v860, 4
        %v874 = vsel %vm382, %v873, %v836
        %v875 = vrot.slane %v836, 4
        %v876 = vsel %vm382, %v860, %v875
        %v877 = vpack.c.bf16 %v862, %v862
        %v878 = vpack.c.bf16 %v864, %v864
        %v879 = vpack.c.bf16 %v866, %v866
        %v880 = vpack.c.bf16 %v868, %v868
        %v881 = vpack.c.bf16 %v870, %v870
        %v882 = vpack.c.bf16 %v872, %v872
        %v883 = vpack.c.bf16 %v874, %v874
        %v884 = vpack.c.bf16 %v876, %v876
        %885 = vrot.lane.b32.xlu0 %v353, 64
        %v886 = vpop.permute.xlu0 %885
        %887 = vrot.lane.b32.xlu0 %v616, 64
        %v888 = vpop.permute.xlu0 %887
        %889 = vrot.lane.b32.xlu0 %v618, 64
        %v890 = vpop.permute.xlu0 %889
        %891 = vrot.lane.b32.xlu0 %v620, 64
        %v892 = vpop.permute.xlu0 %891
        %893 = vrot.lane.b32.xlu0 %v622, 64
        %v894 = vpop.permute.xlu0 %893
        %895 = vrot.lane.b32.xlu0 %v624, 64
        %v896 = vpop.permute.xlu0 %895
        %897 = vrot.lane.b32.xlu0 %v626, 64
        %v898 = vpop.permute.xlu0 %897
        %899 = vrot.lane.b32.xlu0 %v628, 64
        %v900 = vpop.permute.xlu0 %899
        %v909 = vrot.slane %v890, 4
        %v910 = vsel %vm382, %v909, %v886
        %v911 = vrot.slane %v886, 4
        %v912 = vsel %vm382, %v890, %v911
        %v914 = vunpack.c.l.s4 1983009808
        %v915 = vunpack.c.0.s8 %v914
        %v916 = vperm.slane %v910, %v915
        %v918 = vunpack.c.l.s4 1983009808
        %v919 = vunpack.c.0.s8 %v918
        %v920 = vperm.slane %v912, %v919
        %v921 = vrot.slane %v892, 4
        %v922 = vsel %vm382, %v921, %v888
        %v923 = vrot.slane %v888, 4
        %v924 = vsel %vm382, %v892, %v923
        %v926 = vunpack.c.l.s4 1983009808
        %v927 = vunpack.c.0.s8 %v926
        %v928 = vperm.slane %v922, %v927
        %v930 = vunpack.c.l.s4 1983009808
        %v931 = vunpack.c.0.s8 %v930
        %v932 = vperm.slane %v924, %v931
        %v933 = vrot.slane %v898, 4
        %v934 = vsel %vm382, %v933, %v894
        %v935 = vrot.slane %v894, 4
        %v936 = vsel %vm382, %v898, %v935
        %v938 = vunpack.c.l.s4 1983009808
        %v939 = vunpack.c.0.s8 %v938
        %v940 = vperm.slane %v934, %v939
        %v942 = vunpack.c.l.s4 1983009808
        %v943 = vunpack.c.0.s8 %v942
        %v944 = vperm.slane %v936, %v943
        %v945 = vrot.slane %v900, 4
        %v946 = vsel %vm382, %v945, %v896
        %v947 = vrot.slane %v896, 4
        %v948 = vsel %vm382, %v900, %v947
        %v950 = vunpack.c.l.s4 1983009808
        %v951 = vunpack.c.0.s8 %v950
        %v952 = vperm.slane %v946, %v951
        %v954 = vunpack.c.l.s4 1983009808
        %v955 = vunpack.c.0.s8 %v954
        %v956 = vperm.slane %v948, %v955
        %v957 = vrot.slane %v928, 4
        %v958 = vsel %vm382, %v957, %v916
        %v959 = vrot.slane %v916, 4
        %v960 = vsel %vm382, %v928, %v959
        %v962 = vunpack.c.l.s4 1934713408
        %v963 = vunpack.c.0.s8 %v962
        %v964 = vperm.slane %v958, %v963
        %v966 = vunpack.c.l.s4 1934713408
        %v967 = vunpack.c.0.s8 %v966
        %v968 = vperm.slane %v960, %v967
        %v969 = vrot.slane %v932, 4
        %v970 = vsel %vm382, %v969, %v920
        %v971 = vrot.slane %v920, 4
        %v972 = vsel %vm382, %v932, %v971
        %v974 = vunpack.c.l.s4 1934713408
        %v975 = vunpack.c.0.s8 %v974
        %v976 = vperm.slane %v970, %v975
        %v978 = vunpack.c.l.s4 1934713408
        %v979 = vunpack.c.0.s8 %v978
        %v980 = vperm.slane %v972, %v979
        %v981 = vrot.slane %v952, 4
        %v982 = vsel %vm382, %v981, %v940
        %v983 = vrot.slane %v940, 4
        %v984 = vsel %vm382, %v952, %v983
        %v986 = vunpack.c.l.s4 1934713408
        %v987 = vunpack.c.0.s8 %v986
        %v988 = vperm.slane %v982, %v987
        %v990 = vunpack.c.l.s4 1934713408
        %v991 = vunpack.c.0.s8 %v990
        %v992 = vperm.slane %v984, %v991
        %v993 = vrot.slane %v956, 4
        %v994 = vsel %vm382, %v993, %v944
        %v995 = vrot.slane %v944, 4
        %v996 = vsel %vm382, %v956, %v995
        %v998 = vunpack.c.l.s4 1934713408
        %v999 = vunpack.c.0.s8 %v998
        %v1000 = vperm.slane %v994, %v999
        %v1002 = vunpack.c.l.s4 1934713408
        %v1003 = vunpack.c.0.s8 %v1002
        %v1004 = vperm.slane %v996, %v1003
        %v1005 = vrot.slane %v988, 4
        %v1006 = vsel %vm382, %v1005, %v964
        %v1007 = vrot.slane %v964, 4
        %v1008 = vsel %vm382, %v988, %v1007
        %v1009 = vrot.slane %v992, 4
        %v1010 = vsel %vm382, %v1009, %v968
        %v1011 = vrot.slane %v968, 4
        %v1012 = vsel %vm382, %v992, %v1011
        %v1013 = vrot.slane %v1000, 4
        %v1014 = vsel %vm382, %v1013, %v976
        %v1015 = vrot.slane %v976, 4
        %v1016 = vsel %vm382, %v1000, %v1015
        %v1017 = vrot.slane %v1004, 4
        %v1018 = vsel %vm382, %v1017, %v980
        %v1019 = vrot.slane %v980, 4
        %v1020 = vsel %vm382, %v1004, %v1019
        %v1021 = vrot.slane %v1010, 4
        %v1022 = vsel %vm382, %v1021, %v1006
        %v1023 = vrot.slane %v1006, 4
        %v1024 = vsel %vm382, %v1010, %v1023
        %v1026 = vunpack.c.l.s4 1983009808
        %v1027 = vunpack.c.0.s8 %v1026
        %v1028 = vperm.slane %v1022, %v1027
        %v1030 = vunpack.c.l.s4 1983009808
        %v1031 = vunpack.c.0.s8 %v1030
        %v1032 = vperm.slane %v1024, %v1031
        %v1033 = vrot.slane %v1012, 4
        %v1034 = vsel %vm382, %v1033, %v1008
        %v1035 = vrot.slane %v1008, 4
        %v1036 = vsel %vm382, %v1012, %v1035
        %v1038 = vunpack.c.l.s4 1983009808
        %v1039 = vunpack.c.0.s8 %v1038
        %v1040 = vperm.slane %v1034, %v1039
        %v1042 = vunpack.c.l.s4 1983009808
        %v1043 = vunpack.c.0.s8 %v1042
        %v1044 = vperm.slane %v1036, %v1043
        %v1045 = vrot.slane %v1018, 4
        %v1046 = vsel %vm382, %v1045, %v1014
        %v1047 = vrot.slane %v1014, 4
        %v1048 = vsel %vm382, %v1018, %v1047
        %v1050 = vunpack.c.l.s4 1983009808
        %v1051 = vunpack.c.0.s8 %v1050
        %v1052 = vperm.slane %v1046, %v1051
        %v1054 = vunpack.c.l.s4 1983009808
        %v1055 = vunpack.c.0.s8 %v1054
        %v1056 = vperm.slane %v1048, %v1055
        %v1057 = vrot.slane %v1020, 4
        %v1058 = vsel %vm382, %v1057, %v1016
        %v1059 = vrot.slane %v1016, 4
        %v1060 = vsel %vm382, %v1020, %v1059
        %v1062 = vunpack.c.l.s4 1983009808
        %v1063 = vunpack.c.0.s8 %v1062
        %v1064 = vperm.slane %v1058, %v1063
        %v1066 = vunpack.c.l.s4 1983009808
        %v1067 = vunpack.c.0.s8 %v1066
        %v1068 = vperm.slane %v1060, %v1067
        %v1069 = vrot.slane %v1040, 4
        %v1070 = vsel %vm382, %v1069, %v1028
        %v1071 = vrot.slane %v1028, 4
        %v1072 = vsel %vm382, %v1040, %v1071
        %v1074 = vunpack.c.l.s4 1934713408
        %v1075 = vunpack.c.0.s8 %v1074
        %v1076 = vperm.slane %v1070, %v1075
        %v1078 = vunpack.c.l.s4 1934713408
        %v1079 = vunpack.c.0.s8 %v1078
        %v1080 = vperm.slane %v1072, %v1079
        %v1081 = vrot.slane %v1044, 4
        %v1082 = vsel %vm382, %v1081, %v1032
        %v1083 = vrot.slane %v1032, 4
        %v1084 = vsel %vm382, %v1044, %v1083
        %v1086 = vunpack.c.l.s4 1934713408
        %v1087 = vunpack.c.0.s8 %v1086
        %v1088 = vperm.slane %v1082, %v1087
        %v1090 = vunpack.c.l.s4 1934713408
        %v1091 = vunpack.c.0.s8 %v1090
        %v1092 = vperm.slane %v1084, %v1091
        %v1093 = vrot.slane %v1064, 4
        %v1094 = vsel %vm382, %v1093, %v1052
        %v1095 = vrot.slane %v1052, 4
        %v1096 = vsel %vm382, %v1064, %v1095
        %v1098 = vunpack.c.l.s4 1934713408
        %v1099 = vunpack.c.0.s8 %v1098
        %v1100 = vperm.slane %v1094, %v1099
        %v1102 = vunpack.c.l.s4 1934713408
        %v1103 = vunpack.c.0.s8 %v1102
        %v1104 = vperm.slane %v1096, %v1103
        %v1105 = vrot.slane %v1068, 4
        %v1106 = vsel %vm382, %v1105, %v1056
        %v1107 = vrot.slane %v1056, 4
        %v1108 = vsel %vm382, %v1068, %v1107
        %v1110 = vunpack.c.l.s4 1934713408
        %v1111 = vunpack.c.0.s8 %v1110
        %v1112 = vperm.slane %v1106, %v1111
        %v1114 = vunpack.c.l.s4 1934713408
        %v1115 = vunpack.c.0.s8 %v1114
        %v1116 = vperm.slane %v1108, %v1115
        %v1117 = vrot.slane %v1100, 4
        %v1118 = vsel %vm382, %v1117, %v1076
        %v1119 = vrot.slane %v1076, 4
        %v1120 = vsel %vm382, %v1100, %v1119
        %v1121 = vrot.slane %v1104, 4
        %v1122 = vsel %vm382, %v1121, %v1080
        %v1123 = vrot.slane %v1080, 4
        %v1124 = vsel %vm382, %v1104, %v1123
        %v1125 = vrot.slane %v1112, 4
        %v1126 = vsel %vm382, %v1125, %v1088
        %v1127 = vrot.slane %v1088, 4
        %v1128 = vsel %vm382, %v1112, %v1127
        %v1129 = vrot.slane %v1116, 4
        %v1130 = vsel %vm382, %v1129, %v1092
        %v1131 = vrot.slane %v1092, 4
        %v1132 = vsel %vm382, %v1116, %v1131
        %v1133 = vpack.c.bf16 %v1118, %v1118
        %v1134 = vpack.c.bf16 %v1120, %v1120
        %v1135 = vpack.c.bf16 %v1122, %v1122
        %v1136 = vpack.c.bf16 %v1124, %v1124
        %v1137 = vpack.c.bf16 %v1126, %v1126
        %v1138 = vpack.c.bf16 %v1128, %v1128
        %v1139 = vpack.c.bf16 %v1130, %v1130
        %v1140 = vpack.c.bf16 %v1132, %v1132
        %vm1141 = vcmask 31744
        %v1143 = vsel %vm1141, %v606, 0
        %v1146 = vsel %vm1141, %v877, 0
        %1148 = vmatpush.bf16.xpose.msra.mxu0 0
        %1149 = vmatpush.bf16.xpose.msra.mxu0 0
        %1150 = vmatpush.bf16.xpose.msra.mxu0 0
        %1151 = vmatpush.bf16.xpose.msra.mxu0 0
        %1152 = vmatpush.bf16.xpose.msra.mxu0 0
        %1153 = vmatpush.bf16.xpose.msra.mxu0 0
        %1154 = vmatpush.bf16.xpose.msra.mxu0 0
        %1155 = vmatpush.bf16.xpose.msra.mxu0 %v1146
        %1156 = vmatmul.bf16.gmra.mxu0 %v1143
        %v1157 = vpop.f32.mrf.mxu0
        %v1158 = vadd.f32 0.0, %v1157
        %v1159 = vpop.f32.mrf.mxu0
        %1160 = vdwg.mxu0
        %v1162 = vsel %vm1141, %v607, 0
        %v1165 = vsel %vm1141, %v878, 0
        %1167 = vmatpush.bf16.xpose.msra.mxu0 0
        %1168 = vmatpush.bf16.xpose.msra.mxu0 0
        %1169 = vmatpush.bf16.xpose.msra.mxu0 0
        %1170 = vmatpush.bf16.xpose.msra.mxu0 0
        %1171 = vmatpush.bf16.xpose.msra.mxu0 0
        %1172 = vmatpush.bf16.xpose.msra.mxu0 0
        %1173 = vmatpush.bf16.xpose.msra.mxu0 0
        %1174 = vmatpush.bf16.xpose.msra.mxu0 %v1165
        %1175 = vmatmul.bf16.gmra.mxu0 %v1162
        %v1176 = vpop.f32.mrf.mxu0
        %v1177 = vadd.f32 0.0, %v1176
        %v1178 = vpop.f32.mrf.mxu0
        %1179 = vdwg.mxu0
        %v1181 = vsel %vm1141, %v608, 0
        %v1184 = vsel %vm1141, %v879, 0
        %1186 = vmatpush.bf16.xpose.msra.mxu0 0
        %1187 = vmatpush.bf16.xpose.msra.mxu0 0
        %1188 = vmatpush.bf16.xpose.msra.mxu0 0
        %1189 = vmatpush.bf16.xpose.msra.mxu0 0
        %1190 = vmatpush.bf16.xpose.msra.mxu0 0
        %1191 = vmatpush.bf16.xpose.msra.mxu0 0
        %1192 = vmatpush.bf16.xpose.msra.mxu0 0
        %1193 = vmatpush.bf16.xpose.msra.mxu0 %v1184
        %1194 = vmatmul.bf16.gmra.mxu0 %v1181
        %v1195 = vpop.f32.mrf.mxu0
        %v1196 = vadd.f32 0.0, %v1195
        %v1197 = vpop.f32.mrf.mxu0
        %1198 = vdwg.mxu0
        %v1200 = vsel %vm1141, %v609, 0
        %v1203 = vsel %vm1141, %v880, 0
        %1205 = vmatpush.bf16.xpose.msra.mxu0 0
        %1206 = vmatpush.bf16.xpose.msra.mxu0 0
        %1207 = vmatpush.bf16.xpose.msra.mxu0 0
        %1208 = vmatpush.bf16.xpose.msra.mxu0 0
        %1209 = vmatpush.bf16.xpose.msra.mxu0 0
        %1210 = vmatpush.bf16.xpose.msra.mxu0 0
        %1211 = vmatpush.bf16.xpose.msra.mxu0 0
        %1212 = vmatpush.bf16.xpose.msra.mxu0 %v1203
        %1213 = vmatmul.bf16.gmra.mxu0 %v1200
        %v1214 = vpop.f32.mrf.mxu0
        %v1215 = vadd.f32 0.0, %v1214
        %v1216 = vpop.f32.mrf.mxu0
        %1217 = vdwg.mxu0
        %v1219 = vsel %vm1141, %v610, 0
        %v1222 = vsel %vm1141, %v881, 0
        %1224 = vmatpush.bf16.xpose.msra.mxu0 0
        %1225 = vmatpush.bf16.xpose.msra.mxu0 0
        %1226 = vmatpush.bf16.xpose.msra.mxu0 0
        %1227 = vmatpush.bf16.xpose.msra.mxu0 0
        %1228 = vmatpush.bf16.xpose.msra.mxu0 0
        %1229 = vmatpush.bf16.xpose.msra.mxu0 0
        %1230 = vmatpush.bf16.xpose.msra.mxu0 0
        %1231 = vmatpush.bf16.xpose.msra.mxu0 %v1222
        %1232 = vmatmul.bf16.gmra.mxu0 %v1219
        %v1233 = vpop.f32.mrf.mxu0
        %v1234 = vadd.f32 0.0, %v1233
        %v1235 = vpop.f32.mrf.mxu0
        %1236 = vdwg.mxu0
        %v1238 = vsel %vm1141, %v611, 0
        %v1241 = vsel %vm1141, %v882, 0
        %1243 = vmatpush.bf16.xpose.msra.mxu0 0
        %1244 = vmatpush.bf16.xpose.msra.mxu0 0
        %1245 = vmatpush.bf16.xpose.msra.mxu0 0
        %1246 = vmatpush.bf16.xpose.msra.mxu0 0
        %1247 = vmatpush.bf16.xpose.msra.mxu0 0
        %1248 = vmatpush.bf16.xpose.msra.mxu0 0
        %1249 = vmatpush.bf16.xpose.msra.mxu0 0
        %1250 = vmatpush.bf16.xpose.msra.mxu0 %v1241
        %1251 = vmatmul.bf16.gmra.mxu0 %v1238
        %v1252 = vpop.f32.mrf.mxu0
        %v1253 = vadd.f32 0.0, %v1252
        %v1254 = vpop.f32.mrf.mxu0
        %1255 = vdwg.mxu0
        %v1257 = vsel %vm1141, %v612, 0
        %v1260 = vsel %vm1141, %v883, 0
        %1262 = vmatpush.bf16.xpose.msra.mxu0 0
        %1263 = vmatpush.bf16.xpose.msra.mxu0 0
        %1264 = vmatpush.bf16.xpose.msra.mxu0 0
        %1265 = vmatpush.bf16.xpose.msra.mxu0 0
        %1266 = vmatpush.bf16.xpose.msra.mxu0 0
        %1267 = vmatpush.bf16.xpose.msra.mxu0 0
        %1268 = vmatpush.bf16.xpose.msra.mxu0 0
        %1269 = vmatpush.bf16.xpose.msra.mxu0 %v1260
        %1270 = vmatmul.bf16.gmra.mxu0 %v1257
        %v1271 = vpop.f32.mrf.mxu0
        %v1272 = vadd.f32 0.0, %v1271
        %v1273 = vpop.f32.mrf.mxu0
        %1274 = vdwg.mxu0
        %v1276 = vsel %vm1141, %v613, 0
        %v1279 = vsel %vm1141, %v884, 0
        %1281 = vmatpush.bf16.xpose.msra.mxu0 0
        %1282 = vmatpush.bf16.xpose.msra.mxu0 0
        %1283 = vmatpush.bf16.xpose.msra.mxu0 0
        %1284 = vmatpush.bf16.xpose.msra.mxu0 0
        %1285 = vmatpush.bf16.xpose.msra.mxu0 0
        %1286 = vmatpush.bf16.xpose.msra.mxu0 0
        %1287 = vmatpush.bf16.xpose.msra.mxu0 0
        %1288 = vmatpush.bf16.xpose.msra.mxu0 %v1279
        %1289 = vmatmul.bf16.gmra.mxu0 %v1276
        %v1290 = vpop.f32.mrf.mxu0
        %v1291 = vadd.f32 0.0, %v1290
        %v1292 = vpop.f32.mrf.mxu0
        %1293 = vdwg.mxu0
        %vm1294 = vcmask 64512
        %v1295 = vsel %vm1294, %v1158, -inf
        %1296 = vmax.xlane.f32.xlu0 %v1295
        %v1297 = vpop.xlane.xlu0 %1296
        %v1298 = vsel %vm1294, %v1177, -inf
        %1299 = vmax.xlane.f32.xlu0 %v1298
        %v1300 = vpop.xlane.xlu0 %1299
        %v1301 = vsel %vm1294, %v1196, -inf
        %1302 = vmax.xlane.f32.xlu0 %v1301
        %v1303 = vpop.xlane.xlu0 %1302
        %v1304 = vsel %vm1294, %v1215, -inf
        %1305 = vmax.xlane.f32.xlu0 %v1304
        %v1306 = vpop.xlane.xlu0 %1305
        %v1307 = vsel %vm1294, %v1234, -inf
        %1308 = vmax.xlane.f32.xlu0 %v1307
        %v1309 = vpop.xlane.xlu0 %1308
        %v1310 = vsel %vm1294, %v1253, -inf
        %1311 = vmax.xlane.f32.xlu0 %v1310
        %v1312 = vpop.xlane.xlu0 %1311
        %v1313 = vsel %vm1294, %v1272, -inf
        %1314 = vmax.xlane.f32.xlu0 %v1313
        %v1315 = vpop.xlane.xlu0 %1314
        %v1316 = vsel %vm1294, %v1291, -inf
        %1317 = vmax.xlane.f32.xlu0 %v1316
        %v1318 = vpop.xlane.xlu0 %1317
        %v1319 = vsub.f32 %v1158, %v1297
        %v1320 = vsub.f32 %v1177, %v1300
        %v1321 = vsub.f32 %v1196, %v1303
        %v1322 = vsub.f32 %v1215, %v1306
        %v1323 = vsub.f32 %v1234, %v1309
        %v1324 = vsub.f32 %v1253, %v1312
        %v1325 = vsub.f32 %v1272, %v1315
        %v1326 = vsub.f32 %v1291, %v1318
        %v1327 = vmul.f32 %v1319, 1.442695
        %v1328 = vpow.pop %v1327
        %v1329 = vmul.f32 %v1320, 1.442695
        %v1330 = vpow.pop %v1329
        %v1331 = vmul.f32 %v1321, 1.442695
        %v1332 = vpow.pop %v1331
        %v1333 = vmul.f32 %v1322, 1.442695
        %v1334 = vpow.pop %v1333
        %v1335 = vmul.f32 %v1323, 1.442695
        %v1336 = vpow.pop %v1335
        %v1337 = vmul.f32 %v1324, 1.442695
        %v1338 = vpow.pop %v1337
        %v1339 = vmul.f32 %v1325, 1.442695
        %v1340 = vpow.pop %v1339
        %v1341 = vmul.f32 %v1326, 1.442695
        %v1342 = vpow.pop %v1341
        %v1343 = vsel %vm1294, %v1328, 0.0
        %1344 = vadd.xlane.f32.xlu0 %v1343
        %v1345 = vpop.xlane.xlu0 %1344
        %v1346 = vsel %vm1294, %v1330, 0.0
        %1347 = vadd.xlane.f32.xlu0 %v1346
        %v1348 = vpop.xlane.xlu0 %1347
        %v1349 = vsel %vm1294, %v1332, 0.0
        %1350 = vadd.xlane.f32.xlu0 %v1349
        %v1351 = vpop.xlane.xlu0 %1350
        %v1352 = vsel %vm1294, %v1334, 0.0
        %1353 = vadd.xlane.f32.xlu0 %v1352
        %v1354 = vpop.xlane.xlu0 %1353
        %v1355 = vsel %vm1294, %v1336, 0.0
        %1356 = vadd.xlane.f32.xlu0 %v1355
        %v1357 = vpop.xlane.xlu0 %1356
        %v1358 = vsel %vm1294, %v1338, 0.0
        %1359 = vadd.xlane.f32.xlu0 %v1358
        %v1360 = vpop.xlane.xlu0 %1359
        %v1361 = vsel %vm1294, %v1340, 0.0
        %1362 = vadd.xlane.f32.xlu0 %v1361
        %v1363 = vpop.xlane.xlu0 %1362
        %v1364 = vsel %vm1294, %v1342, 0.0
        %1365 = vadd.xlane.f32.xlu0 %v1364
        %v1366 = vpop.xlane.xlu0 %1365
        %v1367 = vrcp.pop %v1345
        %v1368 = vrcp.pop %v1348
        %v1369 = vrcp.pop %v1351
        %v1370 = vrcp.pop %v1354
        %v1371 = vrcp.pop %v1357
        %v1372 = vrcp.pop %v1360
        %v1373 = vrcp.pop %v1363
        %v1374 = vrcp.pop %v1366
        %v1375 = vmul.f32 %v1328, %v1367
        %v1376 = vmul.f32 %v1330, %v1368
        %v1377 = vmul.f32 %v1332, %v1369
        %v1378 = vmul.f32 %v1334, %v1370
        %v1379 = vmul.f32 %v1336, %v1371
        %v1380 = vmul.f32 %v1338, %v1372
        %v1381 = vmul.f32 %v1340, %v1373
        %v1382 = vmul.f32 %v1342, %v1374
        %1383 = vst.msk [vmem:[%s312] sm:$0xff] %vm1294, %v1375
        %1384 = vst.msk [vmem:[%s312 + $0x8] sm:$0xff] %vm1294, %v1376
        %1385 = vst.msk [vmem:[%s312 + $0x10] sm:$0xff] %vm1294, %v1377
        %1386 = vst.msk [vmem:[%s312 + $0x18] sm:$0xff] %vm1294, %v1378
        %1387 = vst.msk [vmem:[%s312 + $0x20] sm:$0xff] %vm1294, %v1379
        %1388 = vst.msk [vmem:[%s312 + $0x28] sm:$0xff] %vm1294, %v1380
        %1389 = vst.msk [vmem:[%s312 + $0x30] sm:$0xff] %vm1294, %v1381
        %1390 = vst.msk [vmem:[%s312 + $0x38] sm:$0xff] %vm1294, %v1382
        %v1391 = vpack.c.bf16 %v1375, %v1375
        %v1392 = vpack.c.bf16 %v1376, %v1376
        %v1393 = vpack.c.bf16 %v1377, %v1377
        %v1394 = vpack.c.bf16 %v1378, %v1378
        %v1395 = vpack.c.bf16 %v1379, %v1379
        %v1396 = vpack.c.bf16 %v1380, %v1380
        %v1397 = vpack.c.bf16 %v1381, %v1381
        %v1398 = vpack.c.bf16 %v1382, %v1382
        %v1400 = vsel %vm1294, %v1391, 0
        %vm1402 = vcmask 1043456
        %v1404 = vsel %vm1402, %v1133, 0
        %1406 = vmatpush.bf16.msra.mxu0 0
        %1407 = vmatpush.bf16.msra.mxu0 0
        %1408 = vmatpush.bf16.msra.mxu0 0
        %1409 = vmatpush.bf16.msra.mxu0 0
        %1410 = vmatpush.bf16.msra.mxu0 0
        %1411 = vmatpush.bf16.msra.mxu0 0
        %1412 = vmatpush.bf16.msra.mxu0 0
        %1413 = vmatpush.bf16.msra.mxu0 %v1404
        %1414 = vmatmul.bf16.gmra.mxu0 %v1400
        %v1415 = vpop.f32.mrf.mxu0
        %v1416 = vadd.f32 0.0, %v1415
        %v1417 = vpop.f32.mrf.mxu0
        %1418 = vdwg.mxu0
        %v1420 = vsel %vm1294, %v1392, 0
        %v1423 = vsel %vm1402, %v1134, 0
        %1425 = vmatpush.bf16.msra.mxu0 0
        %1426 = vmatpush.bf16.msra.mxu0 0
        %1427 = vmatpush.bf16.msra.mxu0 0
        %1428 = vmatpush.bf16.msra.mxu0 0
        %1429 = vmatpush.bf16.msra.mxu0 0
        %1430 = vmatpush.bf16.msra.mxu0 0
        %1431 = vmatpush.bf16.msra.mxu0 0
        %1432 = vmatpush.bf16.msra.mxu0 %v1423
        %1433 = vmatmul.bf16.gmra.mxu0 %v1420
        %v1434 = vpop.f32.mrf.mxu0
        %v1435 = vadd.f32 0.0, %v1434
        %v1436 = vpop.f32.mrf.mxu0
        %1437 = vdwg.mxu0
        %v1439 = vsel %vm1294, %v1393, 0
        %v1442 = vsel %vm1402, %v1135, 0
        %1444 = vmatpush.bf16.msra.mxu0 0
        %1445 = vmatpush.bf16.msra.mxu0 0
        %1446 = vmatpush.bf16.msra.mxu0 0
        %1447 = vmatpush.bf16.msra.mxu0 0
        %1448 = vmatpush.bf16.msra.mxu0 0
        %1449 = vmatpush.bf16.msra.mxu0 0
        %1450 = vmatpush.bf16.msra.mxu0 0
        %1451 = vmatpush.bf16.msra.mxu0 %v1442
        %1452 = vmatmul.bf16.gmra.mxu0 %v1439
        %v1453 = vpop.f32.mrf.mxu0
        %v1454 = vadd.f32 0.0, %v1453
        %v1455 = vpop.f32.mrf.mxu0
        %1456 = vdwg.mxu0
        %v1458 = vsel %vm1294, %v1394, 0
        %v1461 = vsel %vm1402, %v1136, 0
        %1463 = vmatpush.bf16.msra.mxu0 0
        %1464 = vmatpush.bf16.msra.mxu0 0
        %1465 = vmatpush.bf16.msra.mxu0 0
        %1466 = vmatpush.bf16.msra.mxu0 0
        %1467 = vmatpush.bf16.msra.mxu0 0
        %1468 = vmatpush.bf16.msra.mxu0 0
        %1469 = vmatpush.bf16.msra.mxu0 0
        %1470 = vmatpush.bf16.msra.mxu0 %v1461
        %1471 = vmatmul.bf16.gmra.mxu0 %v1458
        %v1472 = vpop.f32.mrf.mxu0
        %v1473 = vadd.f32 0.0, %v1472
        %v1474 = vpop.f32.mrf.mxu0
        %1475 = vdwg.mxu0
        %v1477 = vsel %vm1294, %v1395, 0
        %v1480 = vsel %vm1402, %v1137, 0
        %1482 = vmatpush.bf16.msra.mxu0 0
        %1483 = vmatpush.bf16.msra.mxu0 0
        %1484 = vmatpush.bf16.msra.mxu0 0
        %1485 = vmatpush.bf16.msra.mxu0 0
        %1486 = vmatpush.bf16.msra.mxu0 0
        %1487 = vmatpush.bf16.msra.mxu0 0
        %1488 = vmatpush.bf16.msra.mxu0 0
        %1489 = vmatpush.bf16.msra.mxu0 %v1480
        %1490 = vmatmul.bf16.gmra.mxu0 %v1477
        %v1491 = vpop.f32.mrf.mxu0
        %v1492 = vadd.f32 0.0, %v1491
        %v1493 = vpop.f32.mrf.mxu0
        %1494 = vdwg.mxu0
        %v1496 = vsel %vm1294, %v1396, 0
        %v1499 = vsel %vm1402, %v1138, 0
        %1501 = vmatpush.bf16.msra.mxu0 0
        %1502 = vmatpush.bf16.msra.mxu0 0
        %1503 = vmatpush.bf16.msra.mxu0 0
        %1504 = vmatpush.bf16.msra.mxu0 0
        %1505 = vmatpush.bf16.msra.mxu0 0
        %1506 = vmatpush.bf16.msra.mxu0 0
        %1507 = vmatpush.bf16.msra.mxu0 0
        %1508 = vmatpush.bf16.msra.mxu0 %v1499
        %1509 = vmatmul.bf16.gmra.mxu0 %v1496
        %v1510 = vpop.f32.mrf.mxu0
        %v1511 = vadd.f32 0.0, %v1510
        %v1512 = vpop.f32.mrf.mxu0
        %1513 = vdwg.mxu0
        %v1515 = vsel %vm1294, %v1397, 0
        %v1518 = vsel %vm1402, %v1139, 0
        %1520 = vmatpush.bf16.msra.mxu0 0
        %1521 = vmatpush.bf16.msra.mxu0 0
        %1522 = vmatpush.bf16.msra.mxu0 0
        %1523 = vmatpush.bf16.msra.mxu0 0
        %1524 = vmatpush.bf16.msra.mxu0 0
        %1525 = vmatpush.bf16.msra.mxu0 0
        %1526 = vmatpush.bf16.msra.mxu0 0
        %1527 = vmatpush.bf16.msra.mxu0 %v1518
        %1528 = vmatmul.bf16.gmra.mxu0 %v1515
        %v1529 = vpop.f32.mrf.mxu0
        %v1530 = vadd.f32 0.0, %v1529
        %v1531 = vpop.f32.mrf.mxu0
        %1532 = vdwg.mxu0
        %v1534 = vsel %vm1294, %v1398, 0
        %v1537 = vsel %vm1402, %v1140, 0
        %1539 = vmatpush.bf16.msra.mxu0 0
        %1540 = vmatpush.bf16.msra.mxu0 0
        %1541 = vmatpush.bf16.msra.mxu0 0
        %1542 = vmatpush.bf16.msra.mxu0 0
        %1543 = vmatpush.bf16.msra.mxu0 0
        %1544 = vmatpush.bf16.msra.mxu0 0
        %1545 = vmatpush.bf16.msra.mxu0 0
        %1546 = vmatpush.bf16.msra.mxu0 %v1537
        %1547 = vmatmul.bf16.gmra.mxu0 %v1534
        %v1548 = vpop.f32.mrf.mxu0
        %v1549 = vadd.f32 0.0, %v1548
        %v1550 = vpop.f32.mrf.mxu0
        %1551 = vdwg.mxu0
        %v1552 = vrot.slane %v1454, 4
        %v1553 = vsel %vm382, %v1552, %v1416
        %v1554 = vrot.slane %v1416, 4
        %v1555 = vsel %vm382, %v1454, %v1554
        %v1557 = vunpack.c.l.s4 1983009808
        %v1558 = vunpack.c.0.s8 %v1557
        %v1559 = vperm.slane %v1553, %v1558
        %v1561 = vunpack.c.l.s4 1983009808
        %v1562 = vunpack.c.0.s8 %v1561
        %v1563 = vperm.slane %v1555, %v1562
        %v1564 = vrot.slane %v1473, 4
        %v1565 = vsel %vm382, %v1564, %v1435
        %v1566 = vrot.slane %v1435, 4
        %v1567 = vsel %vm382, %v1473, %v1566
        %v1569 = vunpack.c.l.s4 1983009808
        %v1570 = vunpack.c.0.s8 %v1569
        %v1571 = vperm.slane %v1565, %v1570
        %v1573 = vunpack.c.l.s4 1983009808
        %v1574 = vunpack.c.0.s8 %v1573
        %v1575 = vperm.slane %v1567, %v1574
        %v1576 = vrot.slane %v1530, 4
        %v1577 = vsel %vm382, %v1576, %v1492
        %v1578 = vrot.slane %v1492, 4
        %v1579 = vsel %vm382, %v1530, %v1578
        %v1581 = vunpack.c.l.s4 1983009808
        %v1582 = vunpack.c.0.s8 %v1581
        %v1583 = vperm.slane %v1577, %v1582
        %v1585 = vunpack.c.l.s4 1983009808
        %v1586 = vunpack.c.0.s8 %v1585
        %v1587 = vperm.slane %v1579, %v1586
        %v1588 = vrot.slane %v1549, 4
        %v1589 = vsel %vm382, %v1588, %v1511
        %v1590 = vrot.slane %v1511, 4
        %v1591 = vsel %vm382, %v1549, %v1590
        %v1593 = vunpack.c.l.s4 1983009808
        %v1594 = vunpack.c.0.s8 %v1593
        %v1595 = vperm.slane %v1589, %v1594
        %v1597 = vunpack.c.l.s4 1983009808
        %v1598 = vunpack.c.0.s8 %v1597
        %v1599 = vperm.slane %v1591, %v1598
        %v1600 = vrot.slane %v1571, 4
        %v1601 = vsel %vm382, %v1600, %v1559
        %v1602 = vrot.slane %v1559, 4
        %v1603 = vsel %vm382, %v1571, %v1602
        %v1605 = vunpack.c.l.s4 1934713408
        %v1606 = vunpack.c.0.s8 %v1605
        %v1607 = vperm.slane %v1601, %v1606
        %v1609 = vunpack.c.l.s4 1934713408
        %v1610 = vunpack.c.0.s8 %v1609
        %v1611 = vperm.slane %v1603, %v1610
        %v1612 = vrot.slane %v1575, 4
        %v1613 = vsel %vm382, %v1612, %v1563
        %v1614 = vrot.slane %v1563, 4
        %v1615 = vsel %vm382, %v1575, %v1614
        %v1617 = vunpack.c.l.s4 1934713408
        %v1618 = vunpack.c.0.s8 %v1617
        %v1619 = vperm.slane %v1613, %v1618
        %v1621 = vunpack.c.l.s4 1934713408
        %v1622 = vunpack.c.0.s8 %v1621
        %v1623 = vperm.slane %v1615, %v1622
        %v1624 = vrot.slane %v1595, 4
        %v1625 = vsel %vm382, %v1624, %v1583
        %v1626 = vrot.slane %v1583, 4
        %v1627 = vsel %vm382, %v1595, %v1626
        %v1629 = vunpack.c.l.s4 1934713408
        %v1630 = vunpack.c.0.s8 %v1629
        %v1631 = vperm.slane %v1625, %v1630
        %v1633 = vunpack.c.l.s4 1934713408
        %v1634 = vunpack.c.0.s8 %v1633
        %v1635 = vperm.slane %v1627, %v1634
        %v1636 = vrot.slane %v1599, 4
        %v1637 = vsel %vm382, %v1636, %v1587
        %v1638 = vrot.slane %v1587, 4
        %v1639 = vsel %vm382, %v1599, %v1638
        %v1641 = vunpack.c.l.s4 1934713408
        %v1642 = vunpack.c.0.s8 %v1641
        %v1643 = vperm.slane %v1637, %v1642
        %v1645 = vunpack.c.l.s4 1934713408
        %v1646 = vunpack.c.0.s8 %v1645
        %v1647 = vperm.slane %v1639, %v1646
        %v1648 = vrot.slane %v1631, 4
        %v1649 = vsel %vm382, %v1648, %v1607
        %v1650 = vrot.slane %v1607, 4
        %v1651 = vsel %vm382, %v1631, %v1650
        %v1652 = vrot.slane %v1635, 4
        %v1653 = vsel %vm382, %v1652, %v1611
        %v1654 = vrot.slane %v1611, 4
        %v1655 = vsel %vm382, %v1635, %v1654
        %v1656 = vrot.slane %v1643, 4
        %v1657 = vsel %vm382, %v1656, %v1619
        %v1658 = vrot.slane %v1619, 4
        %v1659 = vsel %vm382, %v1643, %v1658
        %v1660 = vrot.slane %v1647, 4
        %v1661 = vsel %vm382, %v1660, %v1623
        %v1662 = vrot.slane %v1623, 4
        %v1663 = vsel %vm382, %v1647, %v1662
        %v1664 = vrot.slane %v1653, 4
        %v1665 = vsel %vm382, %v1664, %v1649
        %v1666 = vrot.slane %v1649, 4
        %v1667 = vsel %vm382, %v1653, %v1666
        %v1669 = vunpack.c.l.s4 1983009808
        %v1670 = vunpack.c.0.s8 %v1669
        %v1671 = vperm.slane %v1665, %v1670
        %v1673 = vunpack.c.l.s4 1983009808
        %v1674 = vunpack.c.0.s8 %v1673
        %v1675 = vperm.slane %v1667, %v1674
        %v1676 = vrot.slane %v1655, 4
        %v1677 = vsel %vm382, %v1676, %v1651
        %v1678 = vrot.slane %v1651, 4
        %v1679 = vsel %vm382, %v1655, %v1678
        %v1681 = vunpack.c.l.s4 1983009808
        %v1682 = vunpack.c.0.s8 %v1681
        %v1683 = vperm.slane %v1677, %v1682
        %v1685 = vunpack.c.l.s4 1983009808
        %v1686 = vunpack.c.0.s8 %v1685
        %v1687 = vperm.slane %v1679, %v1686
        %v1688 = vrot.slane %v1661, 4
        %v1689 = vsel %vm382, %v1688, %v1657
        %v1690 = vrot.slane %v1657, 4
        %v1691 = vsel %vm382, %v1661, %v1690
        %v1693 = vunpack.c.l.s4 1983009808
        %v1694 = vunpack.c.0.s8 %v1693
        %v1695 = vperm.slane %v1689, %v1694
        %v1697 = vunpack.c.l.s4 1983009808
        %v1698 = vunpack.c.0.s8 %v1697
        %v1699 = vperm.slane %v1691, %v1698
        %v1700 = vrot.slane %v1663, 4
        %v1701 = vsel %vm382, %v1700, %v1659
        %v1702 = vrot.slane %v1659, 4
        %v1703 = vsel %vm382, %v1663, %v1702
        %v1705 = vunpack.c.l.s4 1983009808
        %v1706 = vunpack.c.0.s8 %v1705
        %v1707 = vperm.slane %v1701, %v1706
        %v1709 = vunpack.c.l.s4 1983009808
        %v1710 = vunpack.c.0.s8 %v1709
        %v1711 = vperm.slane %v1703, %v1710
        %v1712 = vrot.slane %v1683, 4
        %v1713 = vsel %vm382, %v1712, %v1671
        %v1714 = vrot.slane %v1671, 4
        %v1715 = vsel %vm382, %v1683, %v1714
        %v1717 = vunpack.c.l.s4 1934713408
        %v1718 = vunpack.c.0.s8 %v1717
        %v1719 = vperm.slane %v1713, %v1718
        %v1721 = vunpack.c.l.s4 1934713408
        %v1722 = vunpack.c.0.s8 %v1721
        %v1723 = vperm.slane %v1715, %v1722
        %v1724 = vrot.slane %v1687, 4
        %v1725 = vsel %vm382, %v1724, %v1675
        %v1726 = vrot.slane %v1675, 4
        %v1727 = vsel %vm382, %v1687, %v1726
        %v1729 = vunpack.c.l.s4 1934713408
        %v1730 = vunpack.c.0.s8 %v1729
        %v1731 = vperm.slane %v1725, %v1730
        %v1733 = vunpack.c.l.s4 1934713408
        %v1734 = vunpack.c.0.s8 %v1733
        %v1735 = vperm.slane %v1727, %v1734
        %v1736 = vrot.slane %v1707, 4
        %v1737 = vsel %vm382, %v1736, %v1695
        %v1738 = vrot.slane %v1695, 4
        %v1739 = vsel %vm382, %v1707, %v1738
        %v1741 = vunpack.c.l.s4 1934713408
        %v1742 = vunpack.c.0.s8 %v1741
        %v1743 = vperm.slane %v1737, %v1742
        %v1745 = vunpack.c.l.s4 1934713408
        %v1746 = vunpack.c.0.s8 %v1745
        %v1747 = vperm.slane %v1739, %v1746
        %v1748 = vrot.slane %v1711, 4
        %v1749 = vsel %vm382, %v1748, %v1699
        %v1750 = vrot.slane %v1699, 4
        %v1751 = vsel %vm382, %v1711, %v1750
        %v1753 = vunpack.c.l.s4 1934713408
        %v1754 = vunpack.c.0.s8 %v1753
        %v1755 = vperm.slane %v1749, %v1754
        %v1757 = vunpack.c.l.s4 1934713408
        %v1758 = vunpack.c.0.s8 %v1757
        %v1759 = vperm.slane %v1751, %v1758
        %v1760 = vrot.slane %v1743, 4
        %v1761 = vsel %vm382, %v1760, %v1719
        %v1762 = vrot.slane %v1719, 4
        %v1763 = vsel %vm382, %v1743, %v1762
        %v1764 = vrot.slane %v1747, 4
        %v1765 = vsel %vm382, %v1764, %v1723
        %v1766 = vrot.slane %v1723, 4
        %v1767 = vsel %vm382, %v1747, %v1766
        %v1768 = vrot.slane %v1755, 4
        %v1769 = vsel %vm382, %v1768, %v1731
        %v1770 = vrot.slane %v1731, 4
        %v1771 = vsel %vm382, %v1755, %v1770
        %v1772 = vrot.slane %v1759, 4
        %v1773 = vsel %vm382, %v1772, %v1735
        %v1774 = vrot.slane %v1735, 4
        %v1775 = vsel %vm382, %v1759, %v1774
        %1777 = vrot.lane.b32.xlu0 %v1763, 4
        %v1778 = vpop.permute.xlu0 %1777
        %1781 = vrot.lane.b32.xlu0 %v1765, 8
        %v1782 = vpop.permute.xlu0 %1781
        %1785 = vrot.lane.b32.xlu0 %v1767, 12
        %v1786 = vpop.permute.xlu0 %1785
        %1789 = vrot.lane.b32.xlu0 %v1769, 16
        %v1790 = vpop.permute.xlu0 %1789
        %1793 = vrot.lane.b32.xlu0 %v1771, 20
        %v1794 = vpop.permute.xlu0 %1793
        %1797 = vrot.lane.b32.xlu0 %v1773, 24
        %v1798 = vpop.permute.xlu0 %1797
        %1801 = vrot.lane.b32.xlu0 %v1775, 28
        %v1802 = vpop.permute.xlu0 %1801
        %v1804 = vsel %vm1141, %v1761, %v1778
        %v1805 = vsel %vm1294, %v1804, %v1782
        %vm1806 = vcmask 97280
        %v1807 = vsel %vm1806, %v1805, %v1786
        %vm1808 = vcmask 130048
        %v1809 = vsel %vm1808, %v1807, %v1790
        %vm1810 = vcmask 162816
        %v1811 = vsel %vm1810, %v1809, %v1794
        %vm1812 = vcmask 195584
        %v1813 = vsel %vm1812, %v1811, %v1798
        %vm1814 = vcmask 228352
        %v1815 = vsel %vm1814, %v1813, %v1802
        %v1816 = vpack.c.bf16 %v1815, %v1815
        %v1817 = vld [vmem:[#allocation7] sm:$0xf]
        %v1818 = vld [vmem:[#allocation7 + $0x4] sm:$0xf]
        %v1819 = vld [vmem:[#allocation7 + $0x8] sm:$0xf]
        %v1820 = vld [vmem:[#allocation7 + $0xc] sm:$0xf]
        %v1821 = vld [vmem:[%s3] sm:$0x1]
        %v1823 = vperm.slane %v1821, 0
        %v1829 = vunpack.c.l.b16 %v1817
        %v1830 = vunpack.c.l.b16 %v1818
        %v1831 = vunpack.c.l.b16 %v1819
        %v1832 = vunpack.c.l.b16 %v1820
        %v1833 = vpack.c.b16 %v1830, %v1829
        %v1834 = vpack.c.b16 %v1832, %v1831
        %v1838 = vsel %vm339, %v1816, 0
        %1840 = vmatpush.bf16.msra.mxu0 0
        %1841 = vmatpush.bf16.msra.mxu0 0
        %1842 = vmatpush.bf16.msra.mxu0 0
        %1843 = vmatpush.bf16.msra.mxu0 0
        %1844 = vmatpush.bf16.msra.mxu0 0
        %1845 = vmatpush.bf16.msra.mxu0 0
        %1846 = vmatpush.bf16.msra.mxu0 %v1834
        %1847 = vmatpush.bf16.msra.mxu0 %v1833
        %1848 = vmatmul.bf16.gmra.mxu0 %v1838
        %v1849 = vpop.f32.mrf.mxu0
        %v1850 = vadd.f32 %v1823, %v1849
        %v1851 = vpop.f32.mrf.mxu0
        %1852 = vdwg.mxu0
        %1853 = vst.msk [vmem:[%s305] sm:$0xff] %vm339, %v1850
        %s1854 = sand.u32 %s125, 1
        %s1855 = scalar_lea.sflag [#allocation4], %s1854
        %s1856 = sand.u32 %s125, 1
        %s1857 = smul.addr %s1856, 8
        %s1858 = scalar_lea.vmem [#allocation8], %s1857
        %s1859 = sand.u32 %s28, 1
        %s1860 = scalar_lea.sflag [#allocation10], %s1859
        %s1861 = sand.u32 %s151, 1
        %s1862 = smul.addr %s1861, 64
        %s1863 = scalar_lea.vmem [#allocation9], %s1862
        %s1864 = sand.u32 %s28, 1
        %s1865 = scalar_lea.sflag [#allocation10], %s1864
        %s1866 = sand.u32 %s177, 1
        %s1867 = smul.addr %s1866, 8
        %s1868 = scalar_lea.vmem [#allocation11], %s1867
        // Predicated region
        $region49: #{tpu_custom_call.1} parent=35 // pred_check
          %p1869 = pneg %p135
        $region50: #{tpu_custom_call.1} parent=35 // pred_check_branch
          %1871 = sbr.rel (%p1869) target = $region52
        $region51: #{tpu_custom_call.1} parent=35 // pred_region
          %1873 = vsyncadd %s1855, 0
          %s1874 = smul.addr %s28, 8
          %s1875 = scalar_lea.hbm %s4, %s1874
          %s1877 = sshll.u32 %s1858, 4
          %s1878 = int_to_ptr.vmem [resolvable:$true] %s1877
          %s1879 = sshll.u32 %s1875, 4
          %s1880 = int_to_ptr.hbm [resolvable:$true] %s1879
          %1882 = dma.vmem_to_hbm [thread:$0]  %s1878, 128, %s1880, %s1855
        $region52: #{tpu_custom_call.1} parent=35 // pred_fallthru
          _
        // Predicated region
        $region53: #{tpu_custom_call.1} parent=35 // pred_check
          %p1883 = pneg %p161
        $region54: #{tpu_custom_call.1} parent=35 // pred_check_branch
          %1885 = sbr.rel (%p1883) target = $region56
        $region55: #{tpu_custom_call.1} parent=35 // pred_region
          %1887 = vsyncadd %s1860, 0
          %s1888 = smul.addr %s28, 8
          %s1889 = smul.addr %s1888, 8
          %s1890 = scalar_lea.hbm %s5, %s1889
          %s1891 = sshll.u32 %s1863, 4
          %s1892 = int_to_ptr.vmem [resolvable:$true] %s1891
          %s1893 = sshll.u32 %s1890, 4
          %s1894 = int_to_ptr.hbm [resolvable:$true] %s1893
          %1899 = dma.vmem_to_hbm [thread:$0]  %s1892, 1024, %s1894, %s1860, 128, 128, 8
        $region56: #{tpu_custom_call.1} parent=35 // pred_fallthru
          _
        // Predicated region
        $region57: #{tpu_custom_call.1} parent=35 // pred_check
          %p1900 = pneg %p187
        $region58: #{tpu_custom_call.1} parent=35 // pred_check_branch
          %1902 = sbr.rel (%p1900) target = $region60
        $region59: #{tpu_custom_call.1} parent=35 // pred_region
          %1904 = vsyncadd %s1865, 0
          %s1905 = smul.addr %s28, 8
          %s1906 = scalar_lea.hbm %s6, %s1905
          %s1908 = sshll.u32 %s1868, 4
          %s1909 = int_to_ptr.vmem [resolvable:$true] %s1908
          %s1910 = sshll.u32 %s1906, 4
          %s1911 = int_to_ptr.hbm [resolvable:$true] %s1910
          %1913 = dma.vmem_to_hbm [thread:$0]  %s1909, 128, %s1911, %s1865
        $region60: #{tpu_custom_call.1} parent=35 // pred_fallthru
          _
      $region36: #{tpu_custom_call.1} parent=5 // pred_fallthru
        _
      %p1914 = scmp.le.s32.totalorder 2, %s23
      // Predicated region
      $region61: #{tpu_custom_call.1} parent=5 // pred_check
        %p1915 = pneg %p1914
      $region62: #{tpu_custom_call.1} parent=5 // pred_check_branch
        %1917 = sbr.rel (%p1915) target = $region64
      $region63: #{tpu_custom_call.1} parent=5 // pred_region
        %s1918 = ssub.s32 %s23, 2
        // Predicated region
        $region65: #{tpu_custom_call.1} parent=63 // pred_check
          %p1919 = pneg %p141
        $region66: #{tpu_custom_call.1} parent=63 // pred_check_branch
          %1921 = sbr.rel (%p1919) target = $region68
        $region67: #{tpu_custom_call.1} parent=63 // pred_region
          %s1922 = sand.u32 %s126, 1
          %s1923 = scalar_lea.sflag [#allocation4], %s1922
          %s1924 = sand.u32 %s126, 1
          %s1925 = smul.addr %s1924, 8
          %s1926 = scalar_lea.vmem [#allocation8], %s1925
          %1928 = dma.done %s1923, 128
        $region68: #{tpu_custom_call.1} parent=63 // pred_fallthru
          _
        // Predicated region
        $region69: #{tpu_custom_call.1} parent=63 // pred_check
          %p1929 = pneg %p167
        $region70: #{tpu_custom_call.1} parent=63 // pred_check_branch
          %1931 = sbr.rel (%p1929) target = $region72
        $region71: #{tpu_custom_call.1} parent=63 // pred_region
          %s1932 = sand.u32 %s29, 1
          %s1933 = scalar_lea.sflag [#allocation10], %s1932
          %s1934 = sand.u32 %s152, 1
          %s1935 = smul.addr %s1934, 64
          %s1936 = scalar_lea.vmem [#allocation9], %s1935
          %1938 = dma.done %s1933, 1024
        $region72: #{tpu_custom_call.1} parent=63 // pred_fallthru
          _
        // Predicated region
        $region73: #{tpu_custom_call.1} parent=63 // pred_check
          %p1939 = pneg %p193
        $region74: #{tpu_custom_call.1} parent=63 // pred_check_branch
          %1941 = sbr.rel (%p1939) target = $region76
        $region75: #{tpu_custom_call.1} parent=63 // pred_region
          %s1942 = sand.u32 %s29, 1
          %s1943 = scalar_lea.sflag [#allocation10], %s1942
          %s1944 = sand.u32 %s178, 1
          %s1945 = smul.addr %s1944, 8
          %s1946 = scalar_lea.vmem [#allocation11], %s1945
          %1948 = dma.done %s1943, 128
        $region76: #{tpu_custom_call.1} parent=63 // pred_fallthru
          _
      $region64: #{tpu_custom_call.1} parent=5 // pred_fallthru
        _
    $region6: #{tpu_custom_call.1} parent=1 // loop_footer
      %s27 = sadd.s32 1, %s23
    $region7: #{tpu_custom_call.1} parent=1 // loop_footer_branch
      %22 = sbr.rel target = $region3
    $region8: #{tpu_custom_call.1} parent=1 // loop_exit
      _
    %1949 = vsyncpa [#allocation3], 1
    %s1950 = scalar_lea.sflag [#allocation3], 1
    %1951 = vsyncpa %s1950, 1
    %1952 = vsyncpa [#allocation6], 1
    %1953 = vsyncpa [#allocation4], 1
    %s1954 = scalar_lea.sflag [#allocation4], 1
    %1955 = vsyncpa %s1954, 1
    %1956 = vsyncpa [#allocation10], 1
    %s1957 = scalar_lea.sflag [#allocation10], 1
    %1958 = vsyncpa %s1957, 1

</llo_original>
